<compile_context>
chip_gen: v7x
topology: tpu7x:2x2x1
jax: 0.10.0
libtpu: 0.0.40
codegen_flags: <defaults>
</compile_context>

<pallas_src>
import functools
import numpy as np
import jax
import jax.numpy as jnp
from jax.experimental import pallas as pl
from jax.experimental.pallas import tpu as pltpu


# ----------------------------------------------------------------------------
# Fused Pallas kernel: all sep-blocks + head for one image (grid axis = batch)
# ----------------------------------------------------------------------------
def _classnet_kernel(x_ref, mask_ref, wblk_ref, scale_ref, shift_ref,
                     whead_ref, shead_ref, out_ref, *, depth, H, W):
    R = H * W
    # Flat-pixel offsets of the 3x3 taps (tap t = dy*3 + dx).
    offsets = [(dy - 1) * W + (dx - 1) for dy in range(3) for dx in range(3)]

    def im2col_bf16(feat):
        """feat (C, R) f32 -> (9*C, R) bf16 im2col with zero padding via tap masks."""
        pieces = []
        for t, o in enumerate(offsets):
            if o == 0:                                    # center tap: always valid
                pieces.append(feat.astype(jnp.bfloat16))
            else:
                r = pltpu.roll(feat, shift=(-o) % R, axis=1)       # XLU lane rotate
                pieces.append((r * mask_ref[t:t + 1, :]).astype(jnp.bfloat16))
        return jnp.concatenate(pieces, axis=0)            # (9C, R), sublane-aligned

    feat = x_ref[0]                                       # (C, R) f32
    for l in range(depth):                                # unrolled (static depth)
        y = jnp.dot(wblk_ref[l], im2col_bf16(feat),
                    preferred_element_type=jnp.float32)   # MXU matmul, K = 9*C
        y = y * scale_ref[l] + shift_ref[l]               # folded dw-bias + BN_sep + BN_level
        feat = y * jax.nn.sigmoid(y)                      # SiLU
    y = jnp.dot(whead_ref[...], im2col_bf16(feat),
                preferred_element_type=jnp.float32)       # head matmul, K = 9*C
    y = y + shead_ref[...]                                # folded dw-bias + head bias
    out_ref[...] = jax.nn.sigmoid(y)[None]                # (1, COp, R), lane-dense store


# ----------------------------------------------------------------------------
# Host-side folding helpers
# ----------------------------------------------------------------------------
def fold_bn(bn, eps):
    scale = bn["gamma"] / jnp.sqrt(bn["var"] + eps)
    shift = bn["beta"] - bn["mean"] * scale
    return scale, shift


def _fold_sep_conv_T(wdw, wpw):
    """(3,3,C) depthwise x (C,CO) pointwise -> (CO, 9*C) transposed im2col weight."""
    C = wdw.shape[-1]
    co = wpw.shape[-1]
    w = wdw.reshape(9, C, 1) * wpw.reshape(1, C, co)      # (9, C, CO)
    return w.reshape(9 * C, co).T                         # (CO, 9C)


def _tap_mask(H, W):
    """(9, H*W) f32 mask: 1 where the 3x3 tap falls inside the image (zero padding)."""
    hh = np.arange(H)[:, None]
    ww = np.arange(W)[None, :]
    rows = []
    for dy in range(3):
        for dx in range(3):
            valid = ((hh + dy - 1 >= 0) & (hh + dy - 1 < H) &
                     (ww + dx - 1 >= 0) & (ww + dx - 1 < W))
            rows.append(valid.reshape(1, H * W))
    return jnp.asarray(np.concatenate(rows, axis=0).astype(np.float32))


# ----------------------------------------------------------------------------
# Full forward (single pallas_call)
# ----------------------------------------------------------------------------
def class_net_pallas(x_nchw, params, level, num_anchors, num_classes):
    N, C, H, W = x_nchw.shape
    R = H * W
    CO = num_anchors * num_classes
    COp = ((CO + 127) // 128) * 128                       # lane-dense head width
    depth = len(params["blocks"])
    assert depth >= 1, "depth must be >= 1"

    wblks, scales, shifts = [], [], []
    for blk in params["blocks"]:
        s1, h1 = fold_bn(blk["bn_sep"], 1e-4)             # SeparableConvBlock.bn
        s2, h2 = fold_bn(blk["bn_levels"][level], 1e-5)   # bns[i][level]
        scale = s1 * s2
        shift = (blk["bdw"] @ blk["wpw"]) * scale + h1 * s2 + h2   # dw-bias folded in
        wblks.append(_fold_sep_conv_T(blk["wdw"], blk["wpw"]).astype(jnp.bfloat16))
        scales.append(scale.reshape(C, 1))
        shifts.append(shift.reshape(C, 1))
    wblk = jnp.stack(wblks)                               # (depth, C, 9C) bf16
    scale_all = jnp.stack(scales)                         # (depth, C, 1)  f32
    shift_all = jnp.stack(shifts)                         # (depth, C, 1)  f32

    hd = params["head"]
    whead = _fold_sep_conv_T(hd["wdw"], hd["wpw"])        # (CO, 9C)
    whead = jnp.pad(whead, ((0, COp - CO), (0, 0))).astype(jnp.bfloat16)
    shead = jnp.pad(hd["bdw"] @ hd["wpw"] + hd["bpw"], (0, COp - CO)).reshape(COp, 1)

    mask = _tap_mask(H, W)                                # (9, R) f32
    x2d = x_nchw.reshape(N, C, R)                         # NCHW already channels-major

    kernel = functools.partial(_classnet_kernel, depth=depth, H=H, W=W)
    out = pl.pallas_call(
        kernel,
        out_shape=jax.ShapeDtypeStruct((N, COp, R), jnp.float32),
        grid=(N,),
        in_specs=[
            pl.BlockSpec((1, C, R), lambda n: (n, 0, 0)),            # per-image feature
            pl.BlockSpec((9, R), lambda n: (0, 0)),                  # tap-validity mask
            pl.BlockSpec((depth, C, 9 * C), lambda n: (0, 0, 0)),    # folded block weights
            pl.BlockSpec((depth, C, 1), lambda n: (0, 0, 0)),        # folded BN scale
            pl.BlockSpec((depth, C, 1), lambda n: (0, 0, 0)),        # folded BN shift
            pl.BlockSpec((COp, 9 * C), lambda n: (0, 0)),            # folded head weight
            pl.BlockSpec((COp, 1), lambda n: (0, 0)),                # folded head bias
        ],
        out_specs=pl.BlockSpec((1, COp, R), lambda n: (n, 0, 0)),
        compiler_params=pltpu.CompilerParams(
            dimension_semantics=("parallel",)),           # 2 TCs on v7x, loop elsewhere
    )(x2d, mask, wblk, scale_all, shift_all, whead, shead)

    # Drop lane padding, then match torch: permute NCHW->NHWC, view(N, H*W*A, K).
    out = jnp.transpose(out[:, :CO, :], (0, 2, 1))        # (N, R, CO)
    return out.reshape(N, R * num_anchors, num_classes)


# ----------------------------------------------------------------------------
# Parameter setup
# ----------------------------------------------------------------------------
def init_params(key, width, depth, num_classes, num_anchors):
    C = width
    AK = num_anchors * num_classes
    ks = iter(jax.random.split(key, 256))

    def normal(shape, std):
        return std * jax.random.normal(next(ks), shape, dtype=jnp.float32)

    def bn_params(c):
        return dict(
            gamma=1.0 + normal((c,), 0.05),
            beta=normal((c,), 0.05),
            mean=normal((c,), 0.1),
            var=jax.random.uniform(next(ks), (c,), jnp.float32, 0.5, 1.5),
        )

    blocks = []
    for _ in range(depth):
        blocks.append(dict(
            wdw=normal((3, 3, C), 0.15),          # depthwise weight (torch (C,1,3,3))
            bdw=normal((C,), 0.05),               # depthwise bias
            wpw=normal((C, C), 0.15),             # pointwise weight (Cin, Cout)
            bn_sep=bn_params(C),                  # SeparableConvBlock.bn (eps=1e-4)
            bn_levels=[bn_params(C) for _ in range(5)],   # bns[i][level] (eps=1e-5)
        ))
    head = dict(
        wdw=normal((3, 3, C), 0.15),
        bdw=normal((C,), 0.05),
        wpw=normal((C, AK), 0.15),
        bpw=jnp.full((AK,), float(-np.log((1 - 0.01) / 0.01)), jnp.float32),
    )
    return dict(blocks=blocks, head=head)


# ----------------------------------------------------------------------------
# Pure-JAX reference (f32, unfused) for the sanity check
# ----------------------------------------------------------------------------
def _depthwise_ref(x, wdw, bdw):
    k = wdw[:, :, None, :]                                # HWIO with I=1
    y = jax.lax.conv_general_dilated(
        x, k, window_strides=(1, 1), padding="SAME",
        dimension_numbers=("NHWC", "HWIO", "NHWC"),
        feature_group_count=x.shape[-1])
    return y + bdw


def class_net_ref(x_nchw, params, level, num_anchors, num_classes):
    hp = jax.lax.Precision.HIGHEST
    feat = jnp.transpose(x_nchw, (0, 2, 3, 1))            # NHWC
    for blk in params["blocks"]:
        y = _depthwise_ref(feat, blk["wdw"], blk["bdw"])
        y = jnp.einsum("nhwc,cd->nhwd", y, blk["wpw"], precision=hp)
        s1, h1 = fold_bn(blk["bn_sep"], 1e-4)
        s2, h2 = fold_bn(blk["bn_levels"][level], 1e-5)
        y = (y * s1 + h1) * s2 + h2
        feat = y * jax.nn.sigmoid(y)
    hd = params["head"]
    y = _depthwise_ref(feat, hd["wdw"], hd["bdw"])
    y = jnp.einsum("nhwc,cd->nhwd", y, hd["wpw"], precision=hp) + hd["bpw"]
    y = jax.nn.sigmoid(y)
    N, H, W, _ = y.shape
    return y.reshape(N, H * W * num_anchors, num_classes)


# ----------------------------------------------------------------------------
if __name__ == "__main__":
    width, depth = 32, 2
    num_classes, num_anchors = 8, 9
    N, H, W = 2, 16, 16
    level = 0

    key = jax.random.PRNGKey(0)
    kx, kp = jax.random.split(key)
    x_nchw = jax.random.normal(kx, (N, width, H, W), jnp.float32)   # PyTorch NCHW layout
    params = init_params(kp, width, depth, num_classes, num_anchors)

    fwd = jax.jit(class_net_pallas, static_argnums=(2, 3, 4))
    out = jax.block_until_ready(fwd(x_nchw, params, level, num_anchors, num_classes))

    ref = jax.block_until_ready(
        class_net_ref(x_nchw, params, level, num_anchors, num_classes))

    assert out.shape == (N, H * W * num_anchors, num_classes), out.shape
    np.testing.assert_allclose(np.asarray(out), np.asarray(ref), rtol=2e-2, atol=2e-2)

    print("KERNEL_OK")
</pallas_src>

<mosaic_0001>
module attributes {stable_mosaic.version = 11 : i64} {
  func.func @_classnet_kernel(%arg0: i32, %arg1: memref<1x32x256xf32, #tpu.memory_space<vmem>>, %arg2: memref<9x256xf32, #tpu.memory_space<vmem>>, %arg3: memref<2x32x288xbf16, #tpu.memory_space<vmem>>, %arg4: memref<2x32x1xf32, #tpu.memory_space<vmem>>, %arg5: memref<2x32x1xf32, #tpu.memory_space<vmem>>, %arg6: memref<128x288xbf16, #tpu.memory_space<vmem>>, %arg7: memref<128x1xf32, #tpu.memory_space<vmem>>, %arg8: memref<1x128x256xf32, #tpu.memory_space<vmem>>) attributes {dimension_semantics = [#tpu.dimension_semantics<parallel>], iteration_bounds = array<i64: 2>, scalar_prefetch = 0 : i64, scratch_operands = 0 : i64, tpu.core_type = #tpu.core_type<tc>, window_params = [{transform_indices = @transform_0, window_bounds = array<i64: 1, 32, 256>}, {pipeline_mode = #tpu.pipeline_mode<synchronous>, transform_indices = @transform_1, window_bounds = array<i64: 9, 256>}, {pipeline_mode = #tpu.pipeline_mode<synchronous>, transform_indices = @transform_2, window_bounds = array<i64: 2, 32, 288>}, {pipeline_mode = #tpu.pipeline_mode<synchronous>, transform_indices = @transform_3, window_bounds = array<i64: 2, 32, 1>}, {pipeline_mode = #tpu.pipeline_mode<synchronous>, transform_indices = @transform_4, window_bounds = array<i64: 2, 32, 1>}, {pipeline_mode = #tpu.pipeline_mode<synchronous>, transform_indices = @transform_5, window_bounds = array<i64: 128, 288>}, {pipeline_mode = #tpu.pipeline_mode<synchronous>, transform_indices = @transform_6, window_bounds = array<i64: 128, 1>}, {transform_indices = @transform_7, window_bounds = array<i64: 1, 128, 256>}]} {
    %c0 = arith.constant 0 : index
    %c0_0 = arith.constant 0 : index
    %c0_1 = arith.constant 0 : index
    %0 = vector.load %arg1[%c0, %c0_0, %c0_1] : memref<1x32x256xf32, #tpu.memory_space<vmem>>, vector<1x32x256xf32>
    %1 = vector.shape_cast %0 : vector<1x32x256xf32> to vector<32x256xf32>
    %c0_2 = arith.constant 0 : index
    %c0_3 = arith.constant 0 : index
    %c0_4 = arith.constant 0 : index
    %2 = vector.load %arg3[%c0_2, %c0_3, %c0_4] : memref<2x32x288xbf16, #tpu.memory_space<vmem>>, vector<1x32x288xbf16>
    %3 = vector.shape_cast %2 : vector<1x32x288xbf16> to vector<32x288xbf16>
    %c17_i32 = arith.constant 17 : i32
    %4 = tpu.dynamic_rotate %1 by %c17_i32 dim 1 : vector<32x256xf32>, i32 -> vector<32x256xf32>
    %c0_5 = arith.constant 0 : index
    %c0_6 = arith.constant 0 : index
    %5 = vector.load %arg2[%c0_5, %c0_6] : memref<9x256xf32, #tpu.memory_space<vmem>>, vector<1x256xf32>
    %6 = vector.broadcast %5 : vector<1x256xf32> to vector<32x256xf32>
    %7 = arith.mulf %4, %6 : vector<32x256xf32>
    %8 = arith.truncf %7 : vector<32x256xf32> to vector<32x256xbf16>
    %c16_i32 = arith.constant 16 : i32
    %9 = tpu.dynamic_rotate %1 by %c16_i32 dim 1 : vector<32x256xf32>, i32 -> vector<32x256xf32>
    %c1 = arith.constant 1 : index
    %c0_7 = arith.constant 0 : index
    %10 = vector.load %arg2[%c1, %c0_7] : memref<9x256xf32, #tpu.memory_space<vmem>>, vector<1x256xf32>
    %11 = vector.broadcast %10 : vector<1x256xf32> to vector<32x256xf32>
    %12 = arith.mulf %9, %11 : vector<32x256xf32>
    %13 = arith.truncf %12 : vector<32x256xf32> to vector<32x256xbf16>
    %c15_i32 = arith.constant 15 : i32
    %14 = tpu.dynamic_rotate %1 by %c15_i32 dim 1 : vector<32x256xf32>, i32 -> vector<32x256xf32>
    %c2 = arith.constant 2 : index
    %c0_8 = arith.constant 0 : index
    %15 = vector.load %arg2[%c2, %c0_8] : memref<9x256xf32, #tpu.memory_space<vmem>>, vector<1x256xf32>
    %16 = vector.broadcast %15 : vector<1x256xf32> to vector<32x256xf32>
    %17 = arith.mulf %14, %16 : vector<32x256xf32>
    %18 = arith.truncf %17 : vector<32x256xf32> to vector<32x256xbf16>
    %c1_i32 = arith.constant 1 : i32
    %19 = tpu.dynamic_rotate %1 by %c1_i32 dim 1 : vector<32x256xf32>, i32 -> vector<32x256xf32>
    %c3 = arith.constant 3 : index
    %c0_9 = arith.constant 0 : index
    %20 = vector.load %arg2[%c3, %c0_9] : memref<9x256xf32, #tpu.memory_space<vmem>>, vector<1x256xf32>
    %21 = vector.broadcast %20 : vector<1x256xf32> to vector<32x256xf32>
    %22 = arith.mulf %19, %21 : vector<32x256xf32>
    %23 = arith.truncf %22 : vector<32x256xf32> to vector<32x256xbf16>
    %24 = arith.truncf %1 : vector<32x256xf32> to vector<32x256xbf16>
    %c255_i32 = arith.constant 255 : i32
    %25 = tpu.dynamic_rotate %1 by %c255_i32 dim 1 : vector<32x256xf32>, i32 -> vector<32x256xf32>
    %c5 = arith.constant 5 : index
    %c0_10 = arith.constant 0 : index
    %26 = vector.load %arg2[%c5, %c0_10] : memref<9x256xf32, #tpu.memory_space<vmem>>, vector<1x256xf32>
    %27 = vector.broadcast %26 : vector<1x256xf32> to vector<32x256xf32>
    %28 = arith.mulf %25, %27 : vector<32x256xf32>
    %29 = arith.truncf %28 : vector<32x256xf32> to vector<32x256xbf16>
    %c241_i32 = arith.constant 241 : i32
    %30 = tpu.dynamic_rotate %1 by %c241_i32 dim 1 : vector<32x256xf32>, i32 -> vector<32x256xf32>
    %c6 = arith.constant 6 : index
    %c0_11 = arith.constant 0 : index
    %31 = vector.load %arg2[%c6, %c0_11] : memref<9x256xf32, #tpu.memory_space<vmem>>, vector<1x256xf32>
    %32 = vector.broadcast %31 : vector<1x256xf32> to vector<32x256xf32>
    %33 = arith.mulf %30, %32 : vector<32x256xf32>
    %34 = arith.truncf %33 : vector<32x256xf32> to vector<32x256xbf16>
    %c240_i32 = arith.constant 240 : i32
    %35 = tpu.dynamic_rotate %1 by %c240_i32 dim 1 : vector<32x256xf32>, i32 -> vector<32x256xf32>
    %c7 = arith.constant 7 : index
    %c0_12 = arith.constant 0 : index
    %36 = vector.load %arg2[%c7, %c0_12] : memref<9x256xf32, #tpu.memory_space<vmem>>, vector<1x256xf32>
    %37 = vector.broadcast %36 : vector<1x256xf32> to vector<32x256xf32>
    %38 = arith.mulf %35, %37 : vector<32x256xf32>
    %39 = arith.truncf %38 : vector<32x256xf32> to vector<32x256xbf16>
    %c239_i32 = arith.constant 239 : i32
    %40 = tpu.dynamic_rotate %1 by %c239_i32 dim 1 : vector<32x256xf32>, i32 -> vector<32x256xf32>
    %c8 = arith.constant 8 : index
    %c0_13 = arith.constant 0 : index
    %41 = vector.load %arg2[%c8, %c0_13] : memref<9x256xf32, #tpu.memory_space<vmem>>, vector<1x256xf32>
    %42 = vector.broadcast %41 : vector<1x256xf32> to vector<32x256xf32>
    %43 = arith.mulf %40, %42 : vector<32x256xf32>
    %44 = arith.truncf %43 : vector<32x256xf32> to vector<32x256xbf16>
    %45 = tpu.concatenate %8, %13, %18, %23, %24, %29, %34, %39, %44 in 0 : vector<32x256xbf16>, vector<32x256xbf16>, vector<32x256xbf16>, vector<32x256xbf16>, vector<32x256xbf16>, vector<32x256xbf16>, vector<32x256xbf16>, vector<32x256xbf16>, vector<32x256xbf16> -> vector<288x256xbf16>
    %cst = arith.constant dense<0.000000e+00> : vector<32x256xf32>
    %46 = tpu.matmul %3, %45, %cst {dimension_numbers = #tpu.dot_dimension_numbers<[1], [0], [0], [1], [0, 0, 1, 1], [], []>} : vector<32x288xbf16>, vector<288x256xbf16>, vector<32x256xf32> -> vector<32x256xf32>
    %c0_14 = arith.constant 0 : index
    %c0_15 = arith.constant 0 : index
    %c0_16 = arith.constant 0 : index
    %47 = vector.load %arg4[%c0_14, %c0_15, %c0_16] : memref<2x32x1xf32, #tpu.memory_space<vmem>>, vector<1x32x1xf32>
    %48 = vector.shape_cast %47 : vector<1x32x1xf32> to vector<32x1xf32>
    %49 = vector.broadcast %48 : vector<32x1xf32> to vector<32x256xf32>
    %50 = arith.mulf %46, %49 : vector<32x256xf32>
    %c0_17 = arith.constant 0 : index
    %c0_18 = arith.constant 0 : index
    %c0_19 = arith.constant 0 : index
    %51 = vector.load %arg5[%c0_17, %c0_18, %c0_19] : memref<2x32x1xf32, #tpu.memory_space<vmem>>, vector<1x32x1xf32>
    %52 = vector.shape_cast %51 : vector<1x32x1xf32> to vector<32x1xf32>
    %53 = vector.broadcast %52 : vector<32x1xf32> to vector<32x256xf32>
    %54 = arith.addf %50, %53 : vector<32x256xf32>
    %55 = arith.negf %54 : vector<32x256xf32>
    %56 = math.exp %55 : vector<32x256xf32>
    %cst_20 = arith.constant 1.000000e+00 : f32
    %57 = vector.broadcast %cst_20 : f32 to vector<32x256xf32>
    %58 = arith.addf %57, %56 : vector<32x256xf32>
    %59 = arith.divf %57, %58 : vector<32x256xf32>
    %60 = arith.mulf %54, %59 : vector<32x256xf32>
    %c1_21 = arith.constant 1 : index
    %c0_22 = arith.constant 0 : index
    %c0_23 = arith.constant 0 : index
    %61 = vector.load %arg3[%c1_21, %c0_22, %c0_23] : memref<2x32x288xbf16, #tpu.memory_space<vmem>>, vector<1x32x288xbf16>
    %62 = vector.shape_cast %61 : vector<1x32x288xbf16> to vector<32x288xbf16>
    %c17_i32_24 = arith.constant 17 : i32
    %63 = tpu.dynamic_rotate %60 by %c17_i32_24 dim 1 : vector<32x256xf32>, i32 -> vector<32x256xf32>
    %c0_25 = arith.constant 0 : index
    %c0_26 = arith.constant 0 : index
    %64 = vector.load %arg2[%c0_25, %c0_26] : memref<9x256xf32, #tpu.memory_space<vmem>>, vector<1x256xf32>
    %65 = vector.broadcast %64 : vector<1x256xf32> to vector<32x256xf32>
    %66 = arith.mulf %63, %65 : vector<32x256xf32>
    %67 = arith.truncf %66 : vector<32x256xf32> to vector<32x256xbf16>
    %c16_i32_27 = arith.constant 16 : i32
    %68 = tpu.dynamic_rotate %60 by %c16_i32_27 dim 1 : vector<32x256xf32>, i32 -> vector<32x256xf32>
    %c1_28 = arith.constant 1 : index
    %c0_29 = arith.constant 0 : index
    %69 = vector.load %arg2[%c1_28, %c0_29] : memref<9x256xf32, #tpu.memory_space<vmem>>, vector<1x256xf32>
    %70 = vector.broadcast %69 : vector<1x256xf32> to vector<32x256xf32>
    %71 = arith.mulf %68, %70 : vector<32x256xf32>
    %72 = arith.truncf %71 : vector<32x256xf32> to vector<32x256xbf16>
    %c15_i32_30 = arith.constant 15 : i32
    %73 = tpu.dynamic_rotate %60 by %c15_i32_30 dim 1 : vector<32x256xf32>, i32 -> vector<32x256xf32>
    %c2_31 = arith.constant 2 : index
    %c0_32 = arith.constant 0 : index
    %74 = vector.load %arg2[%c2_31, %c0_32] : memref<9x256xf32, #tpu.memory_space<vmem>>, vector<1x256xf32>
    %75 = vector.broadcast %74 : vector<1x256xf32> to vector<32x256xf32>
    %76 = arith.mulf %73, %75 : vector<32x256xf32>
    %77 = arith.truncf %76 : vector<32x256xf32> to vector<32x256xbf16>
    %c1_i32_33 = arith.constant 1 : i32
    %78 = tpu.dynamic_rotate %60 by %c1_i32_33 dim 1 : vector<32x256xf32>, i32 -> vector<32x256xf32>
    %c3_34 = arith.constant 3 : index
    %c0_35 = arith.constant 0 : index
    %79 = vector.load %arg2[%c3_34, %c0_35] : memref<9x256xf32, #tpu.memory_space<vmem>>, vector<1x256xf32>
    %80 = vector.broadcast %79 : vector<1x256xf32> to vector<32x256xf32>
    %81 = arith.mulf %78, %80 : vector<32x256xf32>
    %82 = arith.truncf %81 : vector<32x256xf32> to vector<32x256xbf16>
    %83 = arith.truncf %60 : vector<32x256xf32> to vector<32x256xbf16>
    %c255_i32_36 = arith.constant 255 : i32
    %84 = tpu.dynamic_rotate %60 by %c255_i32_36 dim 1 : vector<32x256xf32>, i32 -> vector<32x256xf32>
    %c5_37 = arith.constant 5 : index
    %c0_38 = arith.constant 0 : index
    %85 = vector.load %arg2[%c5_37, %c0_38] : memref<9x256xf32, #tpu.memory_space<vmem>>, vector<1x256xf32>
    %86 = vector.broadcast %85 : vector<1x256xf32> to vector<32x256xf32>
    %87 = arith.mulf %84, %86 : vector<32x256xf32>
    %88 = arith.truncf %87 : vector<32x256xf32> to vector<32x256xbf16>
    %c241_i32_39 = arith.constant 241 : i32
    %89 = tpu.dynamic_rotate %60 by %c241_i32_39 dim 1 : vector<32x256xf32>, i32 -> vector<32x256xf32>
    %c6_40 = arith.constant 6 : index
    %c0_41 = arith.constant 0 : index
    %90 = vector.load %arg2[%c6_40, %c0_41] : memref<9x256xf32, #tpu.memory_space<vmem>>, vector<1x256xf32>
    %91 = vector.broadcast %90 : vector<1x256xf32> to vector<32x256xf32>
    %92 = arith.mulf %89, %91 : vector<32x256xf32>
    %93 = arith.truncf %92 : vector<32x256xf32> to vector<32x256xbf16>
    %c240_i32_42 = arith.constant 240 : i32
    %94 = tpu.dynamic_rotate %60 by %c240_i32_42 dim 1 : vector<32x256xf32>, i32 -> vector<32x256xf32>
    %c7_43 = arith.constant 7 : index
    %c0_44 = arith.constant 0 : index
    %95 = vector.load %arg2[%c7_43, %c0_44] : memref<9x256xf32, #tpu.memory_space<vmem>>, vector<1x256xf32>
    %96 = vector.broadcast %95 : vector<1x256xf32> to vector<32x256xf32>
    %97 = arith.mulf %94, %96 : vector<32x256xf32>
    %98 = arith.truncf %97 : vector<32x256xf32> to vector<32x256xbf16>
    %c239_i32_45 = arith.constant 239 : i32
    %99 = tpu.dynamic_rotate %60 by %c239_i32_45 dim 1 : vector<32x256xf32>, i32 -> vector<32x256xf32>
    %c8_46 = arith.constant 8 : index
    %c0_47 = arith.constant 0 : index
    %100 = vector.load %arg2[%c8_46, %c0_47] : memref<9x256xf32, #tpu.memory_space<vmem>>, vector<1x256xf32>
    %101 = vector.broadcast %100 : vector<1x256xf32> to vector<32x256xf32>
    %102 = arith.mulf %99, %101 : vector<32x256xf32>
    %103 = arith.truncf %102 : vector<32x256xf32> to vector<32x256xbf16>
    %104 = tpu.concatenate %67, %72, %77, %82, %83, %88, %93, %98, %103 in 0 : vector<32x256xbf16>, vector<32x256xbf16>, vector<32x256xbf16>, vector<32x256xbf16>, vector<32x256xbf16>, vector<32x256xbf16>, vector<32x256xbf16>, vector<32x256xbf16>, vector<32x256xbf16> -> vector<288x256xbf16>
    %cst_48 = arith.constant dense<0.000000e+00> : vector<32x256xf32>
    %105 = tpu.matmul %62, %104, %cst_48 {dimension_numbers = #tpu.dot_dimension_numbers<[1], [0], [0], [1], [0, 0, 1, 1], [], []>} : vector<32x288xbf16>, vector<288x256xbf16>, vector<32x256xf32> -> vector<32x256xf32>
    %c1_49 = arith.constant 1 : index
    %c0_50 = arith.constant 0 : index
    %c0_51 = arith.constant 0 : index
    %106 = vector.load %arg4[%c1_49, %c0_50, %c0_51] : memref<2x32x1xf32, #tpu.memory_space<vmem>>, vector<1x32x1xf32>
    %107 = vector.shape_cast %106 : vector<1x32x1xf32> to vector<32x1xf32>
    %108 = vector.broadcast %107 : vector<32x1xf32> to vector<32x256xf32>
    %109 = arith.mulf %105, %108 : vector<32x256xf32>
    %c1_52 = arith.constant 1 : index
    %c0_53 = arith.constant 0 : index
    %c0_54 = arith.constant 0 : index
    %110 = vector.load %arg5[%c1_52, %c0_53, %c0_54] : memref<2x32x1xf32, #tpu.memory_space<vmem>>, vector<1x32x1xf32>
    %111 = vector.shape_cast %110 : vector<1x32x1xf32> to vector<32x1xf32>
    %112 = vector.broadcast %111 : vector<32x1xf32> to vector<32x256xf32>
    %113 = arith.addf %109, %112 : vector<32x256xf32>
    %114 = arith.negf %113 : vector<32x256xf32>
    %115 = math.exp %114 : vector<32x256xf32>
    %cst_55 = arith.constant 1.000000e+00 : f32
    %116 = vector.broadcast %cst_55 : f32 to vector<32x256xf32>
    %117 = arith.addf %116, %115 : vector<32x256xf32>
    %118 = arith.divf %116, %117 : vector<32x256xf32>
    %119 = arith.mulf %113, %118 : vector<32x256xf32>
    %c0_56 = arith.constant 0 : index
    %c0_57 = arith.constant 0 : index
    %120 = vector.load %arg6[%c0_56, %c0_57] : memref<128x288xbf16, #tpu.memory_space<vmem>>, vector<128x288xbf16>
    %c17_i32_58 = arith.constant 17 : i32
    %121 = tpu.dynamic_rotate %119 by %c17_i32_58 dim 1 : vector<32x256xf32>, i32 -> vector<32x256xf32>
    %c0_59 = arith.constant 0 : index
    %c0_60 = arith.constant 0 : index
    %122 = vector.load %arg2[%c0_59, %c0_60] : memref<9x256xf32, #tpu.memory_space<vmem>>, vector<1x256xf32>
    %123 = vector.broadcast %122 : vector<1x256xf32> to vector<32x256xf32>
    %124 = arith.mulf %121, %123 : vector<32x256xf32>
    %125 = arith.truncf %124 : vector<32x256xf32> to vector<32x256xbf16>
    %c16_i32_61 = arith.constant 16 : i32
    %126 = tpu.dynamic_rotate %119 by %c16_i32_61 dim 1 : vector<32x256xf32>, i32 -> vector<32x256xf32>
    %c1_62 = arith.constant 1 : index
    %c0_63 = arith.constant 0 : index
    %127 = vector.load %arg2[%c1_62, %c0_63] : memref<9x256xf32, #tpu.memory_space<vmem>>, vector<1x256xf32>
    %128 = vector.broadcast %127 : vector<1x256xf32> to vector<32x256xf32>
    %129 = arith.mulf %126, %128 : vector<32x256xf32>
    %130 = arith.truncf %129 : vector<32x256xf32> to vector<32x256xbf16>
    %c15_i32_64 = arith.constant 15 : i32
    %131 = tpu.dynamic_rotate %119 by %c15_i32_64 dim 1 : vector<32x256xf32>, i32 -> vector<32x256xf32>
    %c2_65 = arith.constant 2 : index
    %c0_66 = arith.constant 0 : index
    %132 = vector.load %arg2[%c2_65, %c0_66] : memref<9x256xf32, #tpu.memory_space<vmem>>, vector<1x256xf32>
    %133 = vector.broadcast %132 : vector<1x256xf32> to vector<32x256xf32>
    %134 = arith.mulf %131, %133 : vector<32x256xf32>
    %135 = arith.truncf %134 : vector<32x256xf32> to vector<32x256xbf16>
    %c1_i32_67 = arith.constant 1 : i32
    %136 = tpu.dynamic_rotate %119 by %c1_i32_67 dim 1 : vector<32x256xf32>, i32 -> vector<32x256xf32>
    %c3_68 = arith.constant 3 : index
    %c0_69 = arith.constant 0 : index
    %137 = vector.load %arg2[%c3_68, %c0_69] : memref<9x256xf32, #tpu.memory_space<vmem>>, vector<1x256xf32>
    %138 = vector.broadcast %137 : vector<1x256xf32> to vector<32x256xf32>
    %139 = arith.mulf %136, %138 : vector<32x256xf32>
    %140 = arith.truncf %139 : vector<32x256xf32> to vector<32x256xbf16>
    %141 = arith.truncf %119 : vector<32x256xf32> to vector<32x256xbf16>
    %c255_i32_70 = arith.constant 255 : i32
    %142 = tpu.dynamic_rotate %119 by %c255_i32_70 dim 1 : vector<32x256xf32>, i32 -> vector<32x256xf32>
    %c5_71 = arith.constant 5 : index
    %c0_72 = arith.constant 0 : index
    %143 = vector.load %arg2[%c5_71, %c0_72] : memref<9x256xf32, #tpu.memory_space<vmem>>, vector<1x256xf32>
    %144 = vector.broadcast %143 : vector<1x256xf32> to vector<32x256xf32>
    %145 = arith.mulf %142, %144 : vector<32x256xf32>
    %146 = arith.truncf %145 : vector<32x256xf32> to vector<32x256xbf16>
    %c241_i32_73 = arith.constant 241 : i32
    %147 = tpu.dynamic_rotate %119 by %c241_i32_73 dim 1 : vector<32x256xf32>, i32 -> vector<32x256xf32>
    %c6_74 = arith.constant 6 : index
    %c0_75 = arith.constant 0 : index
    %148 = vector.load %arg2[%c6_74, %c0_75] : memref<9x256xf32, #tpu.memory_space<vmem>>, vector<1x256xf32>
    %149 = vector.broadcast %148 : vector<1x256xf32> to vector<32x256xf32>
    %150 = arith.mulf %147, %149 : vector<32x256xf32>
    %151 = arith.truncf %150 : vector<32x256xf32> to vector<32x256xbf16>
    %c240_i32_76 = arith.constant 240 : i32
    %152 = tpu.dynamic_rotate %119 by %c240_i32_76 dim 1 : vector<32x256xf32>, i32 -> vector<32x256xf32>
    %c7_77 = arith.constant 7 : index
    %c0_78 = arith.constant 0 : index
    %153 = vector.load %arg2[%c7_77, %c0_78] : memref<9x256xf32, #tpu.memory_space<vmem>>, vector<1x256xf32>
    %154 = vector.broadcast %153 : vector<1x256xf32> to vector<32x256xf32>
    %155 = arith.mulf %152, %154 : vector<32x256xf32>
    %156 = arith.truncf %155 : vector<32x256xf32> to vector<32x256xbf16>
    %c239_i32_79 = arith.constant 239 : i32
    %157 = tpu.dynamic_rotate %119 by %c239_i32_79 dim 1 : vector<32x256xf32>, i32 -> vector<32x256xf32>
    %c8_80 = arith.constant 8 : index
    %c0_81 = arith.constant 0 : index
    %158 = vector.load %arg2[%c8_80, %c0_81] : memref<9x256xf32, #tpu.memory_space<vmem>>, vector<1x256xf32>
    %159 = vector.broadcast %158 : vector<1x256xf32> to vector<32x256xf32>
    %160 = arith.mulf %157, %159 : vector<32x256xf32>
    %161 = arith.truncf %160 : vector<32x256xf32> to vector<32x256xbf16>
    %162 = tpu.concatenate %125, %130, %135, %140, %141, %146, %151, %156, %161 in 0 : vector<32x256xbf16>, vector<32x256xbf16>, vector<32x256xbf16>, vector<32x256xbf16>, vector<32x256xbf16>, vector<32x256xbf16>, vector<32x256xbf16>, vector<32x256xbf16>, vector<32x256xbf16> -> vector<288x256xbf16>
    %cst_82 = arith.constant dense<0.000000e+00> : vector<128x256xf32>
    %163 = tpu.matmul %120, %162, %cst_82 {dimension_numbers = #tpu.dot_dimension_numbers<[1], [0], [0], [1], [0, 0, 1, 1], [], []>} : vector<128x288xbf16>, vector<288x256xbf16>, vector<128x256xf32> -> vector<128x256xf32>
    %c0_83 = arith.constant 0 : index
    %c0_84 = arith.constant 0 : index
    %164 = vector.load %arg7[%c0_83, %c0_84] : memref<128x1xf32, #tpu.memory_space<vmem>>, vector<128x1xf32>
    %165 = vector.broadcast %164 : vector<128x1xf32> to vector<128x256xf32>
    %166 = arith.addf %163, %165 : vector<128x256xf32>
    %167 = arith.negf %166 : vector<128x256xf32>
    %168 = math.exp %167 : vector<128x256xf32>
    %cst_85 = arith.constant 1.000000e+00 : f32
    %169 = vector.broadcast %cst_85 : f32 to vector<128x256xf32>
    %170 = arith.addf %169, %168 : vector<128x256xf32>
    %171 = arith.divf %169, %170 : vector<128x256xf32>
    %172 = vector.shape_cast %171 : vector<128x256xf32> to vector<1x128x256xf32>
    %c0_86 = arith.constant 0 : index
    %c0_87 = arith.constant 0 : index
    %c0_88 = arith.constant 0 : index
    %173 = vector.load %arg8[%c0_86, %c0_87, %c0_88] : memref<1x128x256xf32, #tpu.memory_space<vmem>>, vector<1x128x256xf32>
    tpu.vector_store %arg8[%c0_86, %c0_87, %c0_88], %172 {strides = array<i32>} : memref<1x128x256xf32, #tpu.memory_space<vmem>>, vector<1x128x256xf32>,
    return
  }
  func.func @transform_0(%arg0: i32) -> (i32, i32, i32) {
    %c0_i32 = arith.constant 0 : i32
    %c0_i32_0 = arith.constant 0 : i32
    %c0_i32_1 = arith.constant 0 : i32
    return %arg0, %c0_i32, %c0_i32_0 : i32, i32, i32
  }
  func.func @transform_1(%arg0: i32) -> (i32, i32) {
    %c0_i32 = arith.constant 0 : i32
    %c0_i32_0 = arith.constant 0 : i32
    %c0_i32_1 = arith.constant 0 : i32
    return %c0_i32, %c0_i32_0 : i32, i32
  }
  func.func @transform_2(%arg0: i32) -> (i32, i32, i32) {
    %c0_i32 = arith.constant 0 : i32
    %c0_i32_0 = arith.constant 0 : i32
    %c0_i32_1 = arith.constant 0 : i32
    %c0_i32_2 = arith.constant 0 : i32
    return %c0_i32, %c0_i32_0, %c0_i32_1 : i32, i32, i32
  }
  func.func @transform_3(%arg0: i32) -> (i32, i32, i32) {
    %c0_i32 = arith.constant 0 : i32
    %c0_i32_0 = arith.constant 0 : i32
    %c0_i32_1 = arith.constant 0 : i32
    %c0_i32_2 = arith.constant 0 : i32
    return %c0_i32, %c0_i32_0, %c0_i32_1 : i32, i32, i32
  }
  func.func @transform_4(%arg0: i32) -> (i32, i32, i32) {
    %c0_i32 = arith.constant 0 : i32
    %c0_i32_0 = arith.constant 0 : i32
    %c0_i32_1 = arith.constant 0 : i32
    %c0_i32_2 = arith.constant 0 : i32
    return %c0_i32, %c0_i32_0, %c0_i32_1 : i32, i32, i32
  }
  func.func @transform_5(%arg0: i32) -> (i32, i32) {
    %c0_i32 = arith.constant 0 : i32
    %c0_i32_0 = arith.constant 0 : i32
    %c0_i32_1 = arith.constant 0 : i32
    return %c0_i32, %c0_i32_0 : i32, i32
  }
  func.func @transform_6(%arg0: i32) -> (i32, i32) {
    %c0_i32 = arith.constant 0 : i32
    %c0_i32_0 = arith.constant 0 : i32
    %c0_i32_1 = arith.constant 0 : i32
    return %c0_i32, %c0_i32_0 : i32, i32
  }
  func.func @transform_7(%arg0: i32) -> (i32, i32, i32) {
    %c0_i32 = arith.constant 0 : i32
    %c0_i32_0 = arith.constant 0 : i32
    %c0_i32_1 = arith.constant 0 : i32
    return %arg0, %c0_i32, %c0_i32_0 : i32, i32, i32
  }
}

</mosaic_0001>

<llo_original>
// kernel: class_net_pallas.1
$region0: #{class_net_pallas.1}
  #allocation0 [shape = 'u32[]', space=smem, size = 0x4, offset = 0x4, fixed_abs, tag = 'smem constant byte address 0x4 - core index']
  #allocation1 [shape = 'u32[144,128]{1,0:T(1,128)}', space=vmem, size = 0x12000, scoped, tag = 'internal scratch']
  %s0 = inlined_call_operand.vmem [shape: f32[2,32,256], index: 0, kind: input, shape index: {}]
  %s1 = inlined_call_operand.vmem [shape: f32[9,256], index: 1, kind: input, shape index: {}]
  %s2 = inlined_call_operand.vmem [shape: bf16[2,32,288], index: 2, kind: input, shape index: {}]
  %s3 = inlined_call_operand.vmem [shape: f32[2,32,1], index: 3, kind: input, shape index: {}]
  %s4 = inlined_call_operand.vmem [shape: f32[2,32,1], index: 4, kind: input, shape index: {}]
  %s5 = inlined_call_operand.vmem [shape: bf16[128,288], index: 5, kind: input, shape index: {}]
  %s6 = inlined_call_operand.vmem [shape: f32[128,1], index: 6, kind: input, shape index: {}]
  %s7 = inlined_call_operand.vmem [shape: f32[2,128,256], index: 7, kind: output, shape index: {}]
  %s8 = sld [smem:[#allocation0]]
  $region61: #{class_net_pallas.1} parent=0
    _
  %s10 = ssub.s32 1, %s8
  %s11 = scalar_select 0, %s10, %s8
  loop: start=0, step=1, limit=4
  $region2: #{class_net_pallas.1} parent=0 // loop_pre_header
    _
  $region3: #{class_net_pallas.1} parent=0 // loop_header
    %s13 = sphi 0, %s17
    %p14 = scmp.ge.s32.totalorder %s13, 4
    %s23 = sphi 0, %s25
    %s26 = sphi 0, %s23
    %s27 = sphi 0, %s26
    %s43 = sphi 0, %s27
    %s47 = sphi 0, %s47
    %s49 = sphi 0, %s47
    %s50 = sphi 0, %s49
    %s64 = sphi 0, %s50
    %s68 = sphi 0, %s68
    %s70 = sphi 0, %s68
    %s71 = sphi 0, %s70
    %s85 = sphi 0, %s71
    %s89 = sphi 0, %s89
    %s91 = sphi 0, %s89
    %s92 = sphi 0, %s91
    %s106 = sphi 0, %s92
    %s110 = sphi 0, %s110
    %s112 = sphi 0, %s110
    %s113 = sphi 0, %s112
    %s127 = sphi 0, %s113
    %s131 = sphi 0, %s131
    %s133 = sphi 0, %s131
    %s134 = sphi 0, %s133
    %s148 = sphi 0, %s134
    %s152 = sphi 0, %s152
    %s154 = sphi 0, %s152
    %s155 = sphi 0, %s154
    %s169 = sphi 0, %s155
    %s175 = sphi 0, %s177
    %s178 = sphi 0, %s175
    %s179 = sphi 0, %s178
    %s195 = sphi 0, %s179
  $region4: #{class_net_pallas.1} parent=0 // loop_header_branch
    %16 = sbr.rel (%p14) target = $region8
  $region5: #{class_net_pallas.1} parent=0 // loop_body
    %s18 = ssub.s32 %s13, 1
    %s19 = ssub.s32 %s13, 2
    %s20 = sadd.s32 %s13, 1
    %s21 = ssub.s32 %s13, %s20
    %p22 = scmp.eq.s32.totalorder %s21, 0
    %s24 = sadd.s32 %s23, 1
    %s25 = scalar_select %p22, %s23, %s24
    %p28 = pneg %p22
    %p29 = scmp.eq.s32.totalorder %s13, 1
    %p30 = por %p28, %p29
    %p31 = scmp.ne.s32.totalorder %s23, %s26
    %p32 = scmp.eq.s32.totalorder %s13, 0
    %p33 = por %p31, %p32
    %p34 = scmp.ne.s32.totalorder %s23, %s26
    %p35 = scmp.eq.s32.totalorder %s18, 1
    %p36 = por %p34, %p35
    %p37 = scmp.ne.s32.totalorder %s26, %s27
    %p38 = scmp.eq.s32.totalorder %s18, 0
    %p39 = por %p37, %p38
    %p40 = scmp.ne.s32.totalorder %s26, %s27
    %p41 = scmp.eq.s32.totalorder %s19, 1
    %p42 = por %p40, %p41
    %p44 = scmp.ne.s32.totalorder %s27, %s43
    %p45 = scmp.eq.s32.totalorder %s19, 0
    %p46 = por %p44, %p45
    %s48 = sadd.s32 %s47, 1
    %p51 = scmp.eq.s32.totalorder %s13, 1
    %p52 = scmp.ne.s32.totalorder %s47, %s49
    %p53 = scmp.eq.s32.totalorder %s13, 0
    %p54 = por %p52, %p53
    %p55 = scmp.ne.s32.totalorder %s47, %s49
    %p56 = scmp.eq.s32.totalorder %s18, 1
    %p57 = por %p55, %p56
    %p58 = scmp.ne.s32.totalorder %s49, %s50
    %p59 = scmp.eq.s32.totalorder %s18, 0
    %p60 = por %p58, %p59
    %p61 = scmp.ne.s32.totalorder %s49, %s50
    %p62 = scmp.eq.s32.totalorder %s19, 1
    %p63 = por %p61, %p62
    %p65 = scmp.ne.s32.totalorder %s50, %s64
    %p66 = scmp.eq.s32.totalorder %s19, 0
    %p67 = por %p65, %p66
    %s69 = sadd.s32 %s68, 1
    %p72 = scmp.eq.s32.totalorder %s13, 1
    %p73 = scmp.ne.s32.totalorder %s68, %s70
    %p74 = scmp.eq.s32.totalorder %s13, 0
    %p75 = por %p73, %p74
    %p76 = scmp.ne.s32.totalorder %s68, %s70
    %p77 = scmp.eq.s32.totalorder %s18, 1
    %p78 = por %p76, %p77
    %p79 = scmp.ne.s32.totalorder %s70, %s71
    %p80 = scmp.eq.s32.totalorder %s18, 0
    %p81 = por %p79, %p80
    %p82 = scmp.ne.s32.totalorder %s70, %s71
    %p83 = scmp.eq.s32.totalorder %s19, 1
    %p84 = por %p82, %p83
    %p86 = scmp.ne.s32.totalorder %s71, %s85
    %p87 = scmp.eq.s32.totalorder %s19, 0
    %p88 = por %p86, %p87
    %s90 = sadd.s32 %s89, 1
    %p93 = scmp.eq.s32.totalorder %s13, 1
    %p94 = scmp.ne.s32.totalorder %s89, %s91
    %p95 = scmp.eq.s32.totalorder %s13, 0
    %p96 = por %p94, %p95
    %p97 = scmp.ne.s32.totalorder %s89, %s91
    %p98 = scmp.eq.s32.totalorder %s18, 1
    %p99 = por %p97, %p98
    %p100 = scmp.ne.s32.totalorder %s91, %s92
    %p101 = scmp.eq.s32.totalorder %s18, 0
    %p102 = por %p100, %p101
    %p103 = scmp.ne.s32.totalorder %s91, %s92
    %p104 = scmp.eq.s32.totalorder %s19, 1
    %p105 = por %p103, %p104
    %p107 = scmp.ne.s32.totalorder %s92, %s106
    %p108 = scmp.eq.s32.totalorder %s19, 0
    %p109 = por %p107, %p108
    %s111 = sadd.s32 %s110, 1
    %p114 = scmp.eq.s32.totalorder %s13, 1
    %p115 = scmp.ne.s32.totalorder %s110, %s112
    %p116 = scmp.eq.s32.totalorder %s13, 0
    %p117 = por %p115, %p116
    %p118 = scmp.ne.s32.totalorder %s110, %s112
    %p119 = scmp.eq.s32.totalorder %s18, 1
    %p120 = por %p118, %p119
    %p121 = scmp.ne.s32.totalorder %s112, %s113
    %p122 = scmp.eq.s32.totalorder %s18, 0
    %p123 = por %p121, %p122
    %p124 = scmp.ne.s32.totalorder %s112, %s113
    %p125 = scmp.eq.s32.totalorder %s19, 1
    %p126 = por %p124, %p125
    %p128 = scmp.ne.s32.totalorder %s113, %s127
    %p129 = scmp.eq.s32.totalorder %s19, 0
    %p130 = por %p128, %p129
    %s132 = sadd.s32 %s131, 1
    %p135 = scmp.eq.s32.totalorder %s13, 1
    %p136 = scmp.ne.s32.totalorder %s131, %s133
    %p137 = scmp.eq.s32.totalorder %s13, 0
    %p138 = por %p136, %p137
    %p139 = scmp.ne.s32.totalorder %s131, %s133
    %p140 = scmp.eq.s32.totalorder %s18, 1
    %p141 = por %p139, %p140
    %p142 = scmp.ne.s32.totalorder %s133, %s134
    %p143 = scmp.eq.s32.totalorder %s18, 0
    %p144 = por %p142, %p143
    %p145 = scmp.ne.s32.totalorder %s133, %s134
    %p146 = scmp.eq.s32.totalorder %s19, 1
    %p147 = por %p145, %p146
    %p149 = scmp.ne.s32.totalorder %s134, %s148
    %p150 = scmp.eq.s32.totalorder %s19, 0
    %p151 = por %p149, %p150
    %s153 = sadd.s32 %s152, 1
    %p156 = scmp.eq.s32.totalorder %s13, 1
    %p157 = scmp.ne.s32.totalorder %s152, %s154
    %p158 = scmp.eq.s32.totalorder %s13, 0
    %p159 = por %p157, %p158
    %p160 = scmp.ne.s32.totalorder %s152, %s154
    %p161 = scmp.eq.s32.totalorder %s18, 1
    %p162 = por %p160, %p161
    %p163 = scmp.ne.s32.totalorder %s154, %s155
    %p164 = scmp.eq.s32.totalorder %s18, 0
    %p165 = por %p163, %p164
    %p166 = scmp.ne.s32.totalorder %s154, %s155
    %p167 = scmp.eq.s32.totalorder %s19, 1
    %p168 = por %p166, %p167
    %p170 = scmp.ne.s32.totalorder %s155, %s169
    %p171 = scmp.eq.s32.totalorder %s19, 0
    %p172 = por %p170, %p171
    %s173 = ssub.s32 %s13, %s20
    %p174 = scmp.eq.s32.totalorder %s173, 0
    %s176 = sadd.s32 %s175, 1
    %s177 = scalar_select %p174, %s175, %s176
    %p180 = pneg %p174
    %p181 = scmp.eq.s32.totalorder %s13, 1
    %p182 = por %p180, %p181
    %p183 = scmp.ne.s32.totalorder %s175, %s178
    %p184 = scmp.eq.s32.totalorder %s13, 0
    %p185 = por %p183, %p184
    %p186 = scmp.ne.s32.totalorder %s175, %s178
    %p187 = scmp.eq.s32.totalorder %s18, 1
    %p188 = por %p186, %p187
    %p189 = scmp.ne.s32.totalorder %s178, %s179
    %p190 = scmp.eq.s32.totalorder %s18, 0
    %p191 = por %p189, %p190
    %p192 = scmp.ne.s32.totalorder %s178, %s179
    %p193 = scmp.eq.s32.totalorder %s19, 1
    %p194 = por %p192, %p193
    %p196 = scmp.ne.s32.totalorder %s179, %s195
    %p197 = scmp.eq.s32.totalorder %s19, 0
    %p198 = por %p196, %p197
    %p199 = scmp.le.s32.totalorder 1, %s13
    %p200 = scmp.lt.s32.totalorder %s13, 3
    %p201 = pnand %p199, %p200
    %p202 = pneg %p201
    // Predicated region
    $region9: #{class_net_pallas.1} parent=5 // pred_check
      _
    $region10: #{class_net_pallas.1} parent=5 // pred_check_branch
      %204 = sbr.rel (%p201) target = $region12
    $region11: #{class_net_pallas.1} parent=5 // pred_region
      %s205 = ssub.s32 %s13, 1
      // Predicated region
      $region13: #{class_net_pallas.1} parent=11 // pred_check
        %p206 = pneg %p60
      $region14: #{class_net_pallas.1} parent=11 // pred_check_branch
        %208 = sbr.rel (%p206) target = $region16
      $region15: #{class_net_pallas.1} parent=11 // pred_region
        _
      $region16: #{class_net_pallas.1} parent=11 // pred_fallthru
        _
      // Predicated region
      $region17: #{class_net_pallas.1} parent=11 // pred_check
        %p209 = pneg %p81
      $region18: #{class_net_pallas.1} parent=11 // pred_check_branch
        %211 = sbr.rel (%p209) target = $region20
      $region19: #{class_net_pallas.1} parent=11 // pred_region
        _
      $region20: #{class_net_pallas.1} parent=11 // pred_fallthru
        _
      // Predicated region
      $region21: #{class_net_pallas.1} parent=11 // pred_check
        %p212 = pneg %p102
      $region22: #{class_net_pallas.1} parent=11 // pred_check_branch
        %214 = sbr.rel (%p212) target = $region24
      $region23: #{class_net_pallas.1} parent=11 // pred_region
        _
      $region24: #{class_net_pallas.1} parent=11 // pred_fallthru
        _
      // Predicated region
      $region25: #{class_net_pallas.1} parent=11 // pred_check
        %p215 = pneg %p123
      $region26: #{class_net_pallas.1} parent=11 // pred_check_branch
        %217 = sbr.rel (%p215) target = $region28
      $region27: #{class_net_pallas.1} parent=11 // pred_region
        _
      $region28: #{class_net_pallas.1} parent=11 // pred_fallthru
        _
      // Predicated region
      $region29: #{class_net_pallas.1} parent=11 // pred_check
        %p218 = pneg %p144
      $region30: #{class_net_pallas.1} parent=11 // pred_check_branch
        %220 = sbr.rel (%p218) target = $region32
      $region31: #{class_net_pallas.1} parent=11 // pred_region
        _
      $region32: #{class_net_pallas.1} parent=11 // pred_fallthru
        _
      // Predicated region
      $region33: #{class_net_pallas.1} parent=11 // pred_check
        %p221 = pneg %p165
      $region34: #{class_net_pallas.1} parent=11 // pred_check_branch
        %223 = sbr.rel (%p221) target = $region36
      $region35: #{class_net_pallas.1} parent=11 // pred_region
        _
      $region36: #{class_net_pallas.1} parent=11 // pred_fallthru
        _
    $region12: #{class_net_pallas.1} parent=5 // pred_fallthru
      _
    %p224 = scmp.lt.s32.totalorder %s13, 2
    // Predicated region
    $region37: #{class_net_pallas.1} parent=5 // pred_check
      %p225 = pneg %p224
    $region38: #{class_net_pallas.1} parent=5 // pred_check_branch
      %227 = sbr.rel (%p225) target = $region40
    $region39: #{class_net_pallas.1} parent=5 // pred_region
      // Predicated region
      $region41: #{class_net_pallas.1} parent=39 // pred_check
        %p228 = pneg %p33
      $region42: #{class_net_pallas.1} parent=39 // pred_check_branch
        %230 = sbr.rel (%p228) target = $region44
      $region43: #{class_net_pallas.1} parent=39 // pred_region
        %p231 = scmp.lt.s32.totalorder %s13, 1
        %s232 = scalar_select %p231, %s13, 1
        %s233 = smul.addr %s232, 8
        %s234 = smul.addr %s233, 8
        %s235 = scalar_lea.vmem %s0, %s234
      $region44: #{class_net_pallas.1} parent=39 // pred_fallthru
        _
    $region40: #{class_net_pallas.1} parent=5 // pred_fallthru
      _
    %p236 = scmp.le.s32.totalorder 1, %s13
    %p237 = scmp.lt.s32.totalorder %s13, 3
    %p238 = pnand %p236, %p237
    %p239 = pneg %p238
    // Predicated region
    $region45: #{class_net_pallas.1} parent=5 // pred_check
      _
    $region46: #{class_net_pallas.1} parent=5 // pred_check_branch
      %241 = sbr.rel (%p238) target = $region48
    $region47: #{class_net_pallas.1} parent=5 // pred_region
      %s242 = ssub.s32 %s13, 1
      %p243 = scmp.lt.s32.totalorder %s18, 1
      %s244 = scalar_select %p243, %s18, 1
      %s245 = smul.addr %s244, 8
      %s246 = smul.addr %s245, 8
      %s247 = scalar_lea.vmem %s0, %s246
      %p248 = pneg %p39
      %p249 = pneg %p36
      %p250 = pneg %p60
      %p251 = pneg %p57
      %p252 = pneg %p81
      %p253 = pneg %p78
      %p254 = pneg %p102
      %p255 = pneg %p99
      %p256 = pneg %p123
      %p257 = pneg %p120
      %p258 = pneg %p144
      %p259 = pneg %p141
      %p260 = pneg %p165
      %p261 = pneg %p162
      %p262 = pneg %p191
      %p263 = pneg %p188
      %p264 = scmp.lt.s32.totalorder %s18, 1
      %s265 = scalar_select %p264, %s18, 1
      %s266 = smul.addr %s265, 32
      %s267 = smul.addr %s266, 8
      %s268 = scalar_lea.vmem %s7, %s267
      %p269 = scmp.lt.s32.totalorder %s18, 1
      %s270 = scalar_select %p269, %s18, 1
      %s271 = smul.addr %s270, 8
      %s272 = smul.addr %s271, 8
      %s273 = scalar_lea.vmem %s0, %s272
      %p274 = scmp.lt.s32.totalorder %s18, 1
      %s275 = scalar_select %p274, %s18, 1
      %s276 = smul.addr %s275, 32
      %s277 = smul.addr %s276, 8
      %s278 = scalar_lea.vmem %s7, %s277
      %v280 = vld [vmem:[%s273] sm:$0xff]
      %v281 = vld [vmem:[%s273 + $0x8] sm:$0xff]
      %v282 = vld [vmem:[%s273 + $0x10] sm:$0xff]
      %v283 = vld [vmem:[%s273 + $0x18] sm:$0xff]
      %v284 = vld [vmem:[%s273 + $0x20] sm:$0xff]
      %v285 = vld [vmem:[%s273 + $0x28] sm:$0xff]
      %v286 = vld [vmem:[%s273 + $0x30] sm:$0xff]
      %v287 = vld [vmem:[%s273 + $0x38] sm:$0xff]
      %v288 = vld [vmem:[%s2] sm:$0xff]
      %v289 = vld [vmem:[%s2 + $0x8] sm:$0xf]
      %v290 = vld [vmem:[%s2 + $0xc] sm:$0xff]
      %v291 = vld [vmem:[%s2 + $0x14] sm:$0xf]
      %v292 = vld [vmem:[%s2 + $0x18] sm:$0xff]
      %v293 = vld [vmem:[%s2 + $0x20] sm:$0xf]
      %v294 = vld [vmem:[%s2 + $0x24] sm:$0xff]
      %v295 = vld [vmem:[%s2 + $0x2c] sm:$0xf]
      %296 = vrot.lane.b32.xlu0 %v280, 17
      %v297 = vpop.permute.xlu0 %296
      %298 = vrot.lane.b32.xlu0 %v282, 17
      %v299 = vpop.permute.xlu0 %298
      %300 = vrot.lane.b32.xlu0 %v284, 17
      %v301 = vpop.permute.xlu0 %300
      %302 = vrot.lane.b32.xlu0 %v286, 17
      %v303 = vpop.permute.xlu0 %302
      %304 = vrot.lane.b32.xlu0 %v281, 17
      %v305 = vpop.permute.xlu0 %304
      %306 = vrot.lane.b32.xlu0 %v283, 17
      %v307 = vpop.permute.xlu0 %306
      %308 = vrot.lane.b32.xlu0 %v285, 17
      %v309 = vpop.permute.xlu0 %308
      %310 = vrot.lane.b32.xlu0 %v287, 17
      %v311 = vpop.permute.xlu0 %310
      %v312 = vlaneseq
      %v313 = vand.u32 %v312, 127
      %vm314 = vcmp.lt.s32.totalorder %v313, 17
      %v315 = vsel %vm314, %v297, %v305
      %v316 = vsel %vm314, %v299, %v307
      %v317 = vsel %vm314, %v301, %v309
      %v318 = vsel %vm314, %v303, %v311
      %v319 = vsel %vm314, %v305, %v297
      %v320 = vsel %vm314, %v307, %v299
      %v321 = vsel %vm314, %v309, %v301
      %v322 = vsel %vm314, %v311, %v303
      %v323 = vld [vmem:[%s1] ss:$8 sm:$0x3]
      %v325 = vlaneseq
      %v326 = vshrl.u32 %v325, 7
      %v327 = vsub.s32 0, %v326
      %v328 = vrot.slane %v323, %v327
      %v329 = vlaneseq
      %v330 = vshrl.u32 %v329, 7
      %v331 = vsub.s32 1, %v330
      %v332 = vrot.slane %v323, %v331
      %v335 = vmul.f32 %v319, %v328
      %v336 = vmul.f32 %v315, %v332
      %v337 = vmul.f32 %v320, %v328
      %v338 = vmul.f32 %v316, %v332
      %v339 = vmul.f32 %v321, %v328
      %v340 = vmul.f32 %v317, %v332
      %v341 = vmul.f32 %v322, %v328
      %v342 = vmul.f32 %v318, %v332
      %v343 = vpack.c.bf16 %v337, %v335
      %v344 = vpack.c.bf16 %v338, %v336
      %v345 = vpack.c.bf16 %v341, %v339
      %v346 = vpack.c.bf16 %v342, %v340
      %347 = vrot.lane.b32.xlu0 %v280, 16
      %v348 = vpop.permute.xlu0 %347
      %349 = vrot.lane.b32.xlu0 %v282, 16
      %v350 = vpop.permute.xlu0 %349
      %351 = vrot.lane.b32.xlu0 %v284, 16
      %v352 = vpop.permute.xlu0 %351
      %353 = vrot.lane.b32.xlu0 %v286, 16
      %v354 = vpop.permute.xlu0 %353
      %355 = vrot.lane.b32.xlu0 %v281, 16
      %v356 = vpop.permute.xlu0 %355
      %357 = vrot.lane.b32.xlu0 %v283, 16
      %v358 = vpop.permute.xlu0 %357
      %359 = vrot.lane.b32.xlu0 %v285, 16
      %v360 = vpop.permute.xlu0 %359
      %361 = vrot.lane.b32.xlu0 %v287, 16
      %v362 = vpop.permute.xlu0 %361
      %vm363 = vcmp.lt.s32.totalorder %v313, 16
      %v364 = vsel %vm363, %v348, %v356
      %v365 = vsel %vm363, %v350, %v358
      %v366 = vsel %vm363, %v352, %v360
      %v367 = vsel %vm363, %v354, %v362
      %v368 = vsel %vm363, %v356, %v348
      %v369 = vsel %vm363, %v358, %v350
      %v370 = vsel %vm363, %v360, %v352
      %v371 = vsel %vm363, %v362, %v354
      %s372 = scalar_lea.vmem %s1, 1
      %v373 = vld [vmem:[%s372] ss:$8 sm:$0x3]
      %v375 = vlaneseq
      %v376 = vshrl.u32 %v375, 7
      %v377 = vsub.s32 0, %v376
      %v378 = vrot.slane %v373, %v377
      %v379 = vlaneseq
      %v380 = vshrl.u32 %v379, 7
      %v381 = vsub.s32 1, %v380
      %v382 = vrot.slane %v373, %v381
      %v385 = vmul.f32 %v368, %v378
      %v386 = vmul.f32 %v364, %v382
      %v387 = vmul.f32 %v369, %v378
      %v388 = vmul.f32 %v365, %v382
      %v389 = vmul.f32 %v370, %v378
      %v390 = vmul.f32 %v366, %v382
      %v391 = vmul.f32 %v371, %v378
      %v392 = vmul.f32 %v367, %v382
      %v393 = vpack.c.bf16 %v387, %v385
      %v394 = vpack.c.bf16 %v388, %v386
      %v395 = vpack.c.bf16 %v391, %v389
      %v396 = vpack.c.bf16 %v392, %v390
      %397 = vrot.lane.b32.xlu0 %v280, 15
      %v398 = vpop.permute.xlu0 %397
      %399 = vrot.lane.b32.xlu0 %v282, 15
      %v400 = vpop.permute.xlu0 %399
      %401 = vrot.lane.b32.xlu0 %v284, 15
      %v402 = vpop.permute.xlu0 %401
      %403 = vrot.lane.b32.xlu0 %v286, 15
      %v404 = vpop.permute.xlu0 %403
      %405 = vrot.lane.b32.xlu0 %v281, 15
      %v406 = vpop.permute.xlu0 %405
      %407 = vrot.lane.b32.xlu0 %v283, 15
      %v408 = vpop.permute.xlu0 %407
      %409 = vrot.lane.b32.xlu0 %v285, 15
      %v410 = vpop.permute.xlu0 %409
      %411 = vrot.lane.b32.xlu0 %v287, 15
      %v412 = vpop.permute.xlu0 %411
      %vm413 = vcmp.lt.s32.totalorder %v313, 15
      %v414 = vsel %vm413, %v398, %v406
      %v415 = vsel %vm413, %v400, %v408
      %v416 = vsel %vm413, %v402, %v410
      %v417 = vsel %vm413, %v404, %v412
      %v418 = vsel %vm413, %v406, %v398
      %v419 = vsel %vm413, %v408, %v400
      %v420 = vsel %vm413, %v410, %v402
      %v421 = vsel %vm413, %v412, %v404
      %s422 = scalar_lea.vmem %s1, 2
      %v423 = vld [vmem:[%s422] ss:$8 sm:$0x3]
      %v425 = vlaneseq
      %v426 = vshrl.u32 %v425, 7
      %v427 = vsub.s32 0, %v426
      %v428 = vrot.slane %v423, %v427
      %v429 = vlaneseq
      %v430 = vshrl.u32 %v429, 7
      %v431 = vsub.s32 1, %v430
      %v432 = vrot.slane %v423, %v431
      %v435 = vmul.f32 %v418, %v428
      %v436 = vmul.f32 %v414, %v432
      %v437 = vmul.f32 %v419, %v428
      %v438 = vmul.f32 %v415, %v432
      %v439 = vmul.f32 %v420, %v428
      %v440 = vmul.f32 %v416, %v432
      %v441 = vmul.f32 %v421, %v428
      %v442 = vmul.f32 %v417, %v432
      %v443 = vpack.c.bf16 %v437, %v435
      %v444 = vpack.c.bf16 %v438, %v436
      %v445 = vpack.c.bf16 %v441, %v439
      %v446 = vpack.c.bf16 %v442, %v440
      %447 = vrot.lane.b32.xlu0 %v280, 1
      %v448 = vpop.permute.xlu0 %447
      %449 = vrot.lane.b32.xlu0 %v282, 1
      %v450 = vpop.permute.xlu0 %449
      %451 = vrot.lane.b32.xlu0 %v284, 1
      %v452 = vpop.permute.xlu0 %451
      %453 = vrot.lane.b32.xlu0 %v286, 1
      %v454 = vpop.permute.xlu0 %453
      %455 = vrot.lane.b32.xlu0 %v281, 1
      %v456 = vpop.permute.xlu0 %455
      %457 = vrot.lane.b32.xlu0 %v283, 1
      %v458 = vpop.permute.xlu0 %457
      %459 = vrot.lane.b32.xlu0 %v285, 1
      %v460 = vpop.permute.xlu0 %459
      %461 = vrot.lane.b32.xlu0 %v287, 1
      %v462 = vpop.permute.xlu0 %461
      %vm463 = vcmp.lt.s32.totalorder %v313, 1
      %v464 = vsel %vm463, %v448, %v456
      %v465 = vsel %vm463, %v450, %v458
      %v466 = vsel %vm463, %v452, %v460
      %v467 = vsel %vm463, %v454, %v462
      %v468 = vsel %vm463, %v456, %v448
      %v469 = vsel %vm463, %v458, %v450
      %v470 = vsel %vm463, %v460, %v452
      %v471 = vsel %vm463, %v462, %v454
      %s472 = scalar_lea.vmem %s1, 3
      %v473 = vld [vmem:[%s472] ss:$8 sm:$0x3]
      %v475 = vlaneseq
      %v476 = vshrl.u32 %v475, 7
      %v477 = vsub.s32 0, %v476
      %v478 = vrot.slane %v473, %v477
      %v479 = vlaneseq
      %v480 = vshrl.u32 %v479, 7
      %v481 = vsub.s32 1, %v480
      %v482 = vrot.slane %v473, %v481
      %v485 = vmul.f32 %v468, %v478
      %v486 = vmul.f32 %v464, %v482
      %v487 = vmul.f32 %v469, %v478
      %v488 = vmul.f32 %v465, %v482
      %v489 = vmul.f32 %v470, %v478
      %v490 = vmul.f32 %v466, %v482
      %v491 = vmul.f32 %v471, %v478
      %v492 = vmul.f32 %v467, %v482
      %v493 = vpack.c.bf16 %v487, %v485
      %v494 = vpack.c.bf16 %v488, %v486
      %v495 = vpack.c.bf16 %v491, %v489
      %v496 = vpack.c.bf16 %v492, %v490
      %v497 = vpack.c.bf16 %v282, %v280
      %v498 = vpack.c.bf16 %v283, %v281
      %v499 = vpack.c.bf16 %v286, %v284
      %v500 = vpack.c.bf16 %v287, %v285
      %501 = vrot.lane.b32.xlu0 %v280, 127
      %v502 = vpop.permute.xlu0 %501
      %503 = vrot.lane.b32.xlu0 %v282, 127
      %v504 = vpop.permute.xlu0 %503
      %505 = vrot.lane.b32.xlu0 %v284, 127
      %v506 = vpop.permute.xlu0 %505
      %507 = vrot.lane.b32.xlu0 %v286, 127
      %v508 = vpop.permute.xlu0 %507
      %509 = vrot.lane.b32.xlu0 %v281, 127
      %v510 = vpop.permute.xlu0 %509
      %511 = vrot.lane.b32.xlu0 %v283, 127
      %v512 = vpop.permute.xlu0 %511
      %513 = vrot.lane.b32.xlu0 %v285, 127
      %v514 = vpop.permute.xlu0 %513
      %515 = vrot.lane.b32.xlu0 %v287, 127
      %v516 = vpop.permute.xlu0 %515
      %vm517 = vcmp.lt.s32.totalorder %v313, 127
      %v518 = vsel %vm517, %v502, %v510
      %v519 = vsel %vm517, %v504, %v512
      %v520 = vsel %vm517, %v506, %v514
      %v521 = vsel %vm517, %v508, %v516
      %v522 = vsel %vm517, %v510, %v502
      %v523 = vsel %vm517, %v512, %v504
      %v524 = vsel %vm517, %v514, %v506
      %v525 = vsel %vm517, %v516, %v508
      %s526 = scalar_lea.vmem %s1, 5
      %v527 = vld [vmem:[%s526] ss:$8 sm:$0x3]
      %v529 = vlaneseq
      %v530 = vshrl.u32 %v529, 7
      %v531 = vsub.s32 0, %v530
      %v532 = vrot.slane %v527, %v531
      %v533 = vlaneseq
      %v534 = vshrl.u32 %v533, 7
      %v535 = vsub.s32 1, %v534
      %v536 = vrot.slane %v527, %v535
      %v539 = vmul.f32 %v518, %v532
      %v540 = vmul.f32 %v522, %v536
      %v541 = vmul.f32 %v519, %v532
      %v542 = vmul.f32 %v523, %v536
      %v543 = vmul.f32 %v520, %v532
      %v544 = vmul.f32 %v524, %v536
      %v545 = vmul.f32 %v521, %v532
      %v546 = vmul.f32 %v525, %v536
      %v547 = vpack.c.bf16 %v541, %v539
      %v548 = vpack.c.bf16 %v542, %v540
      %v549 = vpack.c.bf16 %v545, %v543
      %v550 = vpack.c.bf16 %v546, %v544
      %551 = vrot.lane.b32.xlu0 %v280, 113
      %v552 = vpop.permute.xlu0 %551
      %553 = vrot.lane.b32.xlu0 %v282, 113
      %v554 = vpop.permute.xlu0 %553
      %555 = vrot.lane.b32.xlu0 %v284, 113
      %v556 = vpop.permute.xlu0 %555
      %557 = vrot.lane.b32.xlu0 %v286, 113
      %v558 = vpop.permute.xlu0 %557
      %559 = vrot.lane.b32.xlu0 %v281, 113
      %v560 = vpop.permute.xlu0 %559
      %561 = vrot.lane.b32.xlu0 %v283, 113
      %v562 = vpop.permute.xlu0 %561
      %563 = vrot.lane.b32.xlu0 %v285, 113
      %v564 = vpop.permute.xlu0 %563
      %565 = vrot.lane.b32.xlu0 %v287, 113
      %v566 = vpop.permute.xlu0 %565
      %vm567 = vcmp.lt.s32.totalorder %v313, 113
      %v568 = vsel %vm567, %v552, %v560
      %v569 = vsel %vm567, %v554, %v562
      %v570 = vsel %vm567, %v556, %v564
      %v571 = vsel %vm567, %v558, %v566
      %v572 = vsel %vm567, %v560, %v552
      %v573 = vsel %vm567, %v562, %v554
      %v574 = vsel %vm567, %v564, %v556
      %v575 = vsel %vm567, %v566, %v558
      %s576 = scalar_lea.vmem %s1, 6
      %v577 = vld [vmem:[%s576] ss:$8 sm:$0x3]
      %v579 = vlaneseq
      %v580 = vshrl.u32 %v579, 7
      %v581 = vsub.s32 0, %v580
      %v582 = vrot.slane %v577, %v581
      %v583 = vlaneseq
      %v584 = vshrl.u32 %v583, 7
      %v585 = vsub.s32 1, %v584
      %v586 = vrot.slane %v577, %v585
      %v589 = vmul.f32 %v568, %v582
      %v590 = vmul.f32 %v572, %v586
      %v591 = vmul.f32 %v569, %v582
      %v592 = vmul.f32 %v573, %v586
      %v593 = vmul.f32 %v570, %v582
      %v594 = vmul.f32 %v574, %v586
      %v595 = vmul.f32 %v571, %v582
      %v596 = vmul.f32 %v575, %v586
      %v597 = vpack.c.bf16 %v591, %v589
      %v598 = vpack.c.bf16 %v592, %v590
      %v599 = vpack.c.bf16 %v595, %v593
      %v600 = vpack.c.bf16 %v596, %v594
      %601 = vrot.lane.b32.xlu0 %v280, 112
      %v602 = vpop.permute.xlu0 %601
      %603 = vrot.lane.b32.xlu0 %v282, 112
      %v604 = vpop.permute.xlu0 %603
      %605 = vrot.lane.b32.xlu0 %v284, 112
      %v606 = vpop.permute.xlu0 %605
      %607 = vrot.lane.b32.xlu0 %v286, 112
      %v608 = vpop.permute.xlu0 %607
      %609 = vrot.lane.b32.xlu0 %v281, 112
      %v610 = vpop.permute.xlu0 %609
      %611 = vrot.lane.b32.xlu0 %v283, 112
      %v612 = vpop.permute.xlu0 %611
      %613 = vrot.lane.b32.xlu0 %v285, 112
      %v614 = vpop.permute.xlu0 %613
      %615 = vrot.lane.b32.xlu0 %v287, 112
      %v616 = vpop.permute.xlu0 %615
      %vm617 = vcmp.lt.s32.totalorder %v313, 112
      %v618 = vsel %vm617, %v602, %v610
      %v619 = vsel %vm617, %v604, %v612
      %v620 = vsel %vm617, %v606, %v614
      %v621 = vsel %vm617, %v608, %v616
      %v622 = vsel %vm617, %v610, %v602
      %v623 = vsel %vm617, %v612, %v604
      %v624 = vsel %vm617, %v614, %v606
      %v625 = vsel %vm617, %v616, %v608
      %s626 = scalar_lea.vmem %s1, 7
      %v627 = vld [vmem:[%s626] ss:$8 sm:$0x3]
      %v629 = vlaneseq
      %v630 = vshrl.u32 %v629, 7
      %v631 = vsub.s32 0, %v630
      %v632 = vrot.slane %v627, %v631
      %v633 = vlaneseq
      %v634 = vshrl.u32 %v633, 7
      %v635 = vsub.s32 1, %v634
      %v636 = vrot.slane %v627, %v635
      %v639 = vmul.f32 %v618, %v632
      %v640 = vmul.f32 %v622, %v636
      %v641 = vmul.f32 %v619, %v632
      %v642 = vmul.f32 %v623, %v636
      %v643 = vmul.f32 %v620, %v632
      %v644 = vmul.f32 %v624, %v636
      %v645 = vmul.f32 %v621, %v632
      %v646 = vmul.f32 %v625, %v636
      %v647 = vpack.c.bf16 %v641, %v639
      %v648 = vpack.c.bf16 %v642, %v640
      %v649 = vpack.c.bf16 %v645, %v643
      %v650 = vpack.c.bf16 %v646, %v644
      %651 = vrot.lane.b32.xlu0 %v280, 111
      %v652 = vpop.permute.xlu0 %651
      %653 = vrot.lane.b32.xlu0 %v282, 111
      %v654 = vpop.permute.xlu0 %653
      %655 = vrot.lane.b32.xlu0 %v284, 111
      %v656 = vpop.permute.xlu0 %655
      %657 = vrot.lane.b32.xlu0 %v286, 111
      %v658 = vpop.permute.xlu0 %657
      %659 = vrot.lane.b32.xlu0 %v281, 111
      %v660 = vpop.permute.xlu0 %659
      %661 = vrot.lane.b32.xlu0 %v283, 111
      %v662 = vpop.permute.xlu0 %661
      %663 = vrot.lane.b32.xlu0 %v285, 111
      %v664 = vpop.permute.xlu0 %663
      %665 = vrot.lane.b32.xlu0 %v287, 111
      %v666 = vpop.permute.xlu0 %665
      %vm667 = vcmp.lt.s32.totalorder %v313, 111
      %v668 = vsel %vm667, %v652, %v660
      %v669 = vsel %vm667, %v654, %v662
      %v670 = vsel %vm667, %v656, %v664
      %v671 = vsel %vm667, %v658, %v666
      %v672 = vsel %vm667, %v660, %v652
      %v673 = vsel %vm667, %v662, %v654
      %v674 = vsel %vm667, %v664, %v656
      %v675 = vsel %vm667, %v666, %v658
      %s676 = scalar_lea.vmem %s1, 16
      %v677 = vld [vmem:[%s676] ss:$8 sm:$0x3]
      %v679 = vlaneseq
      %v680 = vshrl.u32 %v679, 7
      %v681 = vsub.s32 0, %v680
      %v682 = vrot.slane %v677, %v681
      %v683 = vlaneseq
      %v684 = vshrl.u32 %v683, 7
      %v685 = vsub.s32 1, %v684
      %v686 = vrot.slane %v677, %v685
      %v689 = vmul.f32 %v668, %v682
      %v690 = vmul.f32 %v672, %v686
      %v691 = vmul.f32 %v669, %v682
      %v692 = vmul.f32 %v673, %v686
      %v693 = vmul.f32 %v670, %v682
      %v694 = vmul.f32 %v674, %v686
      %v695 = vmul.f32 %v671, %v682
      %v696 = vmul.f32 %v675, %v686
      %v697 = vpack.c.bf16 %v691, %v689
      %v698 = vpack.c.bf16 %v692, %v690
      %v699 = vpack.c.bf16 %v695, %v693
      %v700 = vpack.c.bf16 %v696, %v694
      %v709 = vunpack.c.l.b16 %v288
      %v710 = vunpack.c.h.b16 %v288
      %v711 = vunpack.c.l.b16 %v289
      %v712 = vunpack.c.l.b16 %v290
      %v713 = vunpack.c.h.b16 %v290
      %v714 = vunpack.c.l.b16 %v291
      %v715 = vunpack.c.l.b16 %v292
      %v716 = vunpack.c.h.b16 %v292
      %v717 = vunpack.c.l.b16 %v293
      %v718 = vunpack.c.l.b16 %v294
      %v719 = vunpack.c.h.b16 %v294
      %v720 = vunpack.c.l.b16 %v295
      %v721 = vpack.c.b16 %v712, %v709
      %v722 = vpack.c.b16 %v713, %v710
      %v723 = vpack.c.b16 %v714, %v711
      %v724 = vpack.c.b16 %v718, %v715
      %v725 = vpack.c.b16 %v719, %v716
      %v726 = vpack.c.b16 %v720, %v717
      %vm731 = vcmask 261120
      %v733 = vsel %vm731, %v723, 0
      %v736 = vsel %vm731, %v726, 0
      %738 = vmatprep.subr.bf16.mxu0 %v344
      %739 = vmatpush1.bf16.msra.mxu0 %v343
      %740 = vmatprep.subr.bf16.mxu0 %v346
      %741 = vmatpush1.bf16.msra.mxu0 %v345
      %742 = vmatprep.subr.bf16.mxu0 %v394
      %743 = vmatpush1.bf16.msra.mxu0 %v393
      %744 = vmatprep.subr.bf16.mxu0 %v396
      %745 = vmatpush1.bf16.msra.mxu0 %v395
      %746 = vmatprep.subr.bf16.mxu0 %v444
      %747 = vmatpush1.bf16.msra.mxu0 %v443
      %748 = vmatprep.subr.bf16.mxu0 %v446
      %749 = vmatpush1.bf16.msra.mxu0 %v445
      %750 = vmatprep.subr.bf16.mxu0 %v494
      %751 = vmatpush1.bf16.msra.mxu0 %v493
      %752 = vmatprep.subr.bf16.mxu0 %v496
      %753 = vmatpush1.bf16.msra.mxu0 %v495
      %754 = vmatprep.subr.bf16.mxu0 %v498
      %755 = vmatpush1.bf16.msra.mxu0 %v497
      %756 = vmatprep.subr.bf16.mxu0 %v500
      %757 = vmatpush1.bf16.msra.mxu0 %v499
      %758 = vmatprep.subr.bf16.mxu0 %v548
      %759 = vmatpush1.bf16.msra.mxu0 %v547
      %760 = vmatprep.subr.bf16.mxu0 %v550
      %761 = vmatpush1.bf16.msra.mxu0 %v549
      %762 = vmatprep.subr.bf16.mxu0 %v598
      %763 = vmatpush1.bf16.msra.mxu0 %v597
      %764 = vmatprep.subr.bf16.mxu0 %v600
      %765 = vmatpush1.bf16.msra.mxu0 %v599
      %766 = vmatprep.subr.bf16.mxu0 %v648
      %767 = vmatpush1.bf16.msra.mxu0 %v647
      %768 = vmatprep.subr.bf16.mxu0 %v650
      %769 = vmatpush1.bf16.msra.mxu0 %v649
      %770 = vmatprep.mubr.bf16.mxu0 %v722
      %771 = vmatmul.mubr.bf16.gmra.mrb[0].mxu0 %v721
      %v772 = vpop.f32.mrb[0].mxu0
      %v773 = vadd.f32 0.0, %v772
      %v774 = vpop.f32.mrb[0].mxu0
      %v775 = vadd.f32 0.0, %v774
      %v776 = vpop.f32.mrb[0].mxu0
      %v777 = vadd.f32 0.0, %v776
      %v778 = vpop.f32.mrb[0].mxu0
      %v779 = vadd.f32 0.0, %v778
      %780 = vmatprep.mubr.bf16.mxu0 %v725
      %781 = vmatmul.mubr.bf16.gmra.mrb[0].mxu0 %v724
      %v782 = vpop.f32.mrb[0].mxu0
      %v783 = vadd.f32 0.0, %v782
      %v784 = vpop.f32.mrb[0].mxu0
      %v785 = vadd.f32 0.0, %v784
      %v786 = vpop.f32.mrb[0].mxu0
      %v787 = vadd.f32 0.0, %v786
      %v788 = vpop.f32.mrb[0].mxu0
      %v789 = vadd.f32 0.0, %v788
      %790 = vdwg.mxu0
      %791 = vmatprep.subr.bf16.mxu0 %v698
      %792 = vmatpush1.bf16.msra.mxu0 %v697
      %793 = vmatprep.subr.bf16.mxu0 %v700
      %794 = vmatpush1.bf16.msra.mxu0 %v699
      %795 = vmatprep.subr.bf16.mxu0 0
      %796 = vmatpush1.bf16.msra.mxu0 0
      %797 = vmatprep.subr.bf16.mxu0 0
      %798 = vmatpush1.bf16.msra.mxu0 0
      %799 = vmatprep.subr.bf16.mxu0 0
      %800 = vmatpush1.bf16.msra.mxu0 0
      %801 = vmatprep.subr.bf16.mxu0 0
      %802 = vmatpush1.bf16.msra.mxu0 0
      %803 = vmatprep.subr.bf16.mxu0 0
      %804 = vmatpush1.bf16.msra.mxu0 0
      %805 = vmatprep.subr.bf16.mxu0 0
      %806 = vmatpush1.bf16.msra.mxu0 0
      %807 = vmatprep.subr.bf16.mxu0 0
      %808 = vmatpush1.bf16.msra.mxu0 0
      %809 = vmatprep.subr.bf16.mxu0 0
      %810 = vmatpush1.bf16.msra.mxu0 0
      %811 = vmatprep.subr.bf16.mxu0 0
      %812 = vmatpush1.bf16.msra.mxu0 0
      %813 = vmatprep.subr.bf16.mxu0 0
      %814 = vmatpush1.bf16.msra.mxu0 0
      %815 = vmatprep.subr.bf16.mxu0 0
      %816 = vmatpush1.bf16.msra.mxu0 0
      %817 = vmatprep.subr.bf16.mxu0 0
      %818 = vmatpush1.bf16.msra.mxu0 0
      %819 = vmatprep.subr.bf16.mxu0 0
      %820 = vmatpush1.bf16.msra.mxu0 0
      %821 = vmatprep.subr.bf16.mxu0 0
      %822 = vmatpush1.bf16.msra.mxu0 0
      %823 = vmatprep.mubr.bf16.mxu0 0
      %824 = vmatmul.mubr.bf16.gmra.mrb[0].mxu0 %v733
      %v825 = vpop.f32.mrb[0].mxu0
      %v826 = vadd.f32 %v773, %v825
      %v827 = vpop.f32.mrb[0].mxu0
      %v828 = vadd.f32 %v775, %v827
      %v829 = vpop.f32.mrb[0].mxu0
      %v830 = vadd.f32 %v777, %v829
      %v831 = vpop.f32.mrb[0].mxu0
      %v832 = vadd.f32 %v779, %v831
      %833 = vmatprep.mubr.bf16.mxu0 0
      %834 = vmatmul.mubr.bf16.gmra.mrb[0].mxu0 %v736
      %v835 = vpop.f32.mrb[0].mxu0
      %v836 = vadd.f32 %v783, %v835
      %v837 = vpop.f32.mrb[0].mxu0
      %v838 = vadd.f32 %v785, %v837
      %v839 = vpop.f32.mrb[0].mxu0
      %v840 = vadd.f32 %v787, %v839
      %v841 = vpop.f32.mrb[0].mxu0
      %v842 = vadd.f32 %v789, %v841
      %843 = vdwg.mxu0
      %v844 = vld [vmem:[%s3] sm:$0xff]
      %v845 = vld [vmem:[%s3 + $0x8] sm:$0xff]
      %v846 = vld [vmem:[%s3 + $0x10] sm:$0xff]
      %v847 = vld [vmem:[%s3 + $0x18] sm:$0xff]
      %849 = vset.pattern.permute.xlu0 0
      %850 = vperm.xlu0 %849, %v844
      %v851 = vpop.permute.xlu0 %850
      %854 = vset.pattern.permute.xlu0 0
      %855 = vperm.xlu0 %854, %v845
      %v856 = vpop.permute.xlu0 %855
      %859 = vset.pattern.permute.xlu0 0
      %860 = vperm.xlu0 %859, %v846
      %v861 = vpop.permute.xlu0 %860
      %864 = vset.pattern.permute.xlu0 0
      %865 = vperm.xlu0 %864, %v847
      %v866 = vpop.permute.xlu0 %865
      %v868 = vmul.f32 %v826, %v851
      %v869 = vmul.f32 %v828, %v851
      %v870 = vmul.f32 %v830, %v856
      %v871 = vmul.f32 %v832, %v856
      %v872 = vmul.f32 %v836, %v861
      %v873 = vmul.f32 %v838, %v861
      %v874 = vmul.f32 %v840, %v866
      %v875 = vmul.f32 %v842, %v866
      %v876 = vld [vmem:[%s4] sm:$0xff]
      %v877 = vld [vmem:[%s4 + $0x8] sm:$0xff]
      %v878 = vld [vmem:[%s4 + $0x10] sm:$0xff]
      %v879 = vld [vmem:[%s4 + $0x18] sm:$0xff]
      %881 = vset.pattern.permute.xlu0 0
      %882 = vperm.xlu0 %881, %v876
      %v883 = vpop.permute.xlu0 %882
      %886 = vset.pattern.permute.xlu0 0
      %887 = vperm.xlu0 %886, %v877
      %v888 = vpop.permute.xlu0 %887
      %891 = vset.pattern.permute.xlu0 0
      %892 = vperm.xlu0 %891, %v878
      %v893 = vpop.permute.xlu0 %892
      %896 = vset.pattern.permute.xlu0 0
      %897 = vperm.xlu0 %896, %v879
      %v898 = vpop.permute.xlu0 %897
      %v900 = vadd.f32 %v868, %v883
      %v901 = vadd.f32 %v869, %v883
      %v902 = vadd.f32 %v870, %v888
      %v903 = vadd.f32 %v871, %v888
      %v904 = vadd.f32 %v872, %v893
      %v905 = vadd.f32 %v873, %v893
      %v906 = vadd.f32 %v874, %v898
      %v907 = vadd.f32 %v875, %v898
      %v908 = vxor.u32 %v900, 2147483648
      %v909 = vxor.u32 %v901, 2147483648
      %v910 = vxor.u32 %v902, 2147483648
      %v911 = vxor.u32 %v903, 2147483648
      %v912 = vxor.u32 %v904, 2147483648
      %v913 = vxor.u32 %v905, 2147483648
      %v914 = vxor.u32 %v906, 2147483648
      %v915 = vxor.u32 %v907, 2147483648
      %v916 = vmul.f32 %v908, 1.442695
      %v917 = vpow.pop %v916
      %v918 = vmul.f32 %v909, 1.442695
      %v919 = vpow.pop %v918
      %v920 = vmul.f32 %v910, 1.442695
      %v921 = vpow.pop %v920
      %v922 = vmul.f32 %v911, 1.442695
      %v923 = vpow.pop %v922
      %v924 = vmul.f32 %v912, 1.442695
      %v925 = vpow.pop %v924
      %v926 = vmul.f32 %v913, 1.442695
      %v927 = vpow.pop %v926
      %v928 = vmul.f32 %v914, 1.442695
      %v929 = vpow.pop %v928
      %v930 = vmul.f32 %v915, 1.442695
      %v931 = vpow.pop %v930
      %v932 = vadd.f32 %v917, 1.0
      %v933 = vadd.f32 %v919, 1.0
      %v934 = vadd.f32 %v921, 1.0
      %v935 = vadd.f32 %v923, 1.0
      %v936 = vadd.f32 %v925, 1.0
      %v937 = vadd.f32 %v927, 1.0
      %v938 = vadd.f32 %v929, 1.0
      %v939 = vadd.f32 %v931, 1.0
      %v940 = vrcp.pop %v932
      %v941 = vmul.f32 1.0, %v940
      %v942 = vrcp.pop %v933
      %v943 = vmul.f32 1.0, %v942
      %v944 = vrcp.pop %v934
      %v945 = vmul.f32 1.0, %v944
      %v946 = vrcp.pop %v935
      %v947 = vmul.f32 1.0, %v946
      %v948 = vrcp.pop %v936
      %v949 = vmul.f32 1.0, %v948
      %v950 = vrcp.pop %v937
      %v951 = vmul.f32 1.0, %v950
      %v952 = vrcp.pop %v938
      %v953 = vmul.f32 1.0, %v952
      %v954 = vrcp.pop %v939
      %v955 = vmul.f32 1.0, %v954
      %v956 = vmul.f32 %v900, %v941
      %v957 = vmul.f32 %v901, %v943
      %v958 = vmul.f32 %v902, %v945
      %v959 = vmul.f32 %v903, %v947
      %v960 = vmul.f32 %v904, %v949
      %v961 = vmul.f32 %v905, %v951
      %v962 = vmul.f32 %v906, %v953
      %v963 = vmul.f32 %v907, %v955
      %s964 = scalar_lea.vmem %s2, 48
      %v965 = vld [vmem:[%s964] sm:$0xff]
      %v966 = vld [vmem:[%s964 + $0x8] sm:$0xf]
      %v967 = vld [vmem:[%s964 + $0xc] sm:$0xff]
      %v968 = vld [vmem:[%s964 + $0x14] sm:$0xf]
      %v969 = vld [vmem:[%s964 + $0x18] sm:$0xff]
      %v970 = vld [vmem:[%s964 + $0x20] sm:$0xf]
      %v971 = vld [vmem:[%s964 + $0x24] sm:$0xff]
      %v972 = vld [vmem:[%s964 + $0x2c] sm:$0xf]
      %973 = vrot.lane.b32.xlu0 %v956, 17
      %v974 = vpop.permute.xlu0 %973
      %975 = vrot.lane.b32.xlu0 %v958, 17
      %v976 = vpop.permute.xlu0 %975
      %977 = vrot.lane.b32.xlu0 %v960, 17
      %v978 = vpop.permute.xlu0 %977
      %979 = vrot.lane.b32.xlu0 %v962, 17
      %v980 = vpop.permute.xlu0 %979
      %981 = vrot.lane.b32.xlu0 %v957, 17
      %v982 = vpop.permute.xlu0 %981
      %983 = vrot.lane.b32.xlu0 %v959, 17
      %v984 = vpop.permute.xlu0 %983
      %985 = vrot.lane.b32.xlu0 %v961, 17
      %v986 = vpop.permute.xlu0 %985
      %987 = vrot.lane.b32.xlu0 %v963, 17
      %v988 = vpop.permute.xlu0 %987
      %v989 = vsel %vm314, %v974, %v982
      %v990 = vsel %vm314, %v976, %v984
      %v991 = vsel %vm314, %v978, %v986
      %v992 = vsel %vm314, %v980, %v988
      %v993 = vsel %vm314, %v982, %v974
      %v994 = vsel %vm314, %v984, %v976
      %v995 = vsel %vm314, %v986, %v978
      %v996 = vsel %vm314, %v988, %v980
      %v997 = vmul.f32 %v993, %v328
      %v998 = vmul.f32 %v989, %v332
      %v999 = vmul.f32 %v994, %v328
      %v1000 = vmul.f32 %v990, %v332
      %v1001 = vmul.f32 %v995, %v328
      %v1002 = vmul.f32 %v991, %v332
      %v1003 = vmul.f32 %v996, %v328
      %v1004 = vmul.f32 %v992, %v332
      %v1005 = vpack.c.bf16 %v999, %v997
      %v1006 = vpack.c.bf16 %v1000, %v998
      %v1007 = vpack.c.bf16 %v1003, %v1001
      %v1008 = vpack.c.bf16 %v1004, %v1002
      %1009 = vrot.lane.b32.xlu0 %v956, 16
      %v1010 = vpop.permute.xlu0 %1009
      %1011 = vrot.lane.b32.xlu0 %v958, 16
      %v1012 = vpop.permute.xlu0 %1011
      %1013 = vrot.lane.b32.xlu0 %v960, 16
      %v1014 = vpop.permute.xlu0 %1013
      %1015 = vrot.lane.b32.xlu0 %v962, 16
      %v1016 = vpop.permute.xlu0 %1015
      %1017 = vrot.lane.b32.xlu0 %v957, 16
      %v1018 = vpop.permute.xlu0 %1017
      %1019 = vrot.lane.b32.xlu0 %v959, 16
      %v1020 = vpop.permute.xlu0 %1019
      %1021 = vrot.lane.b32.xlu0 %v961, 16
      %v1022 = vpop.permute.xlu0 %1021
      %1023 = vrot.lane.b32.xlu0 %v963, 16
      %v1024 = vpop.permute.xlu0 %1023
      %v1025 = vsel %vm363, %v1010, %v1018
      %v1026 = vsel %vm363, %v1012, %v1020
      %v1027 = vsel %vm363, %v1014, %v1022
      %v1028 = vsel %vm363, %v1016, %v1024
      %v1029 = vsel %vm363, %v1018, %v1010
      %v1030 = vsel %vm363, %v1020, %v1012
      %v1031 = vsel %vm363, %v1022, %v1014
      %v1032 = vsel %vm363, %v1024, %v1016
      %v1033 = vmul.f32 %v1029, %v378
      %v1034 = vmul.f32 %v1025, %v382
      %v1035 = vmul.f32 %v1030, %v378
      %v1036 = vmul.f32 %v1026, %v382
      %v1037 = vmul.f32 %v1031, %v378
      %v1038 = vmul.f32 %v1027, %v382
      %v1039 = vmul.f32 %v1032, %v378
      %v1040 = vmul.f32 %v1028, %v382
      %v1041 = vpack.c.bf16 %v1035, %v1033
      %v1042 = vpack.c.bf16 %v1036, %v1034
      %v1043 = vpack.c.bf16 %v1039, %v1037
      %v1044 = vpack.c.bf16 %v1040, %v1038
      %1045 = vrot.lane.b32.xlu0 %v956, 15
      %v1046 = vpop.permute.xlu0 %1045
      %1047 = vrot.lane.b32.xlu0 %v958, 15
      %v1048 = vpop.permute.xlu0 %1047
      %1049 = vrot.lane.b32.xlu0 %v960, 15
      %v1050 = vpop.permute.xlu0 %1049
      %1051 = vrot.lane.b32.xlu0 %v962, 15
      %v1052 = vpop.permute.xlu0 %1051
      %1053 = vrot.lane.b32.xlu0 %v957, 15
      %v1054 = vpop.permute.xlu0 %1053
      %1055 = vrot.lane.b32.xlu0 %v959, 15
      %v1056 = vpop.permute.xlu0 %1055
      %1057 = vrot.lane.b32.xlu0 %v961, 15
      %v1058 = vpop.permute.xlu0 %1057
      %1059 = vrot.lane.b32.xlu0 %v963, 15
      %v1060 = vpop.permute.xlu0 %1059
      %v1061 = vsel %vm413, %v1046, %v1054
      %v1062 = vsel %vm413, %v1048, %v1056
      %v1063 = vsel %vm413, %v1050, %v1058
      %v1064 = vsel %vm413, %v1052, %v1060
      %v1065 = vsel %vm413, %v1054, %v1046
      %v1066 = vsel %vm413, %v1056, %v1048
      %v1067 = vsel %vm413, %v1058, %v1050
      %v1068 = vsel %vm413, %v1060, %v1052
      %v1069 = vmul.f32 %v1065, %v428
      %v1070 = vmul.f32 %v1061, %v432
      %v1071 = vmul.f32 %v1066, %v428
      %v1072 = vmul.f32 %v1062, %v432
      %v1073 = vmul.f32 %v1067, %v428
      %v1074 = vmul.f32 %v1063, %v432
      %v1075 = vmul.f32 %v1068, %v428
      %v1076 = vmul.f32 %v1064, %v432
      %v1077 = vpack.c.bf16 %v1071, %v1069
      %v1078 = vpack.c.bf16 %v1072, %v1070
      %v1079 = vpack.c.bf16 %v1075, %v1073
      %v1080 = vpack.c.bf16 %v1076, %v1074
      %1081 = vrot.lane.b32.xlu0 %v956, 1
      %v1082 = vpop.permute.xlu0 %1081
      %1083 = vrot.lane.b32.xlu0 %v958, 1
      %v1084 = vpop.permute.xlu0 %1083
      %1085 = vrot.lane.b32.xlu0 %v960, 1
      %v1086 = vpop.permute.xlu0 %1085
      %1087 = vrot.lane.b32.xlu0 %v962, 1
      %v1088 = vpop.permute.xlu0 %1087
      %1089 = vrot.lane.b32.xlu0 %v957, 1
      %v1090 = vpop.permute.xlu0 %1089
      %1091 = vrot.lane.b32.xlu0 %v959, 1
      %v1092 = vpop.permute.xlu0 %1091
      %1093 = vrot.lane.b32.xlu0 %v961, 1
      %v1094 = vpop.permute.xlu0 %1093
      %1095 = vrot.lane.b32.xlu0 %v963, 1
      %v1096 = vpop.permute.xlu0 %1095
      %v1097 = vsel %vm463, %v1082, %v1090
      %v1098 = vsel %vm463, %v1084, %v1092
      %v1099 = vsel %vm463, %v1086, %v1094
      %v1100 = vsel %vm463, %v1088, %v1096
      %v1101 = vsel %vm463, %v1090, %v1082
      %v1102 = vsel %vm463, %v1092, %v1084
      %v1103 = vsel %vm463, %v1094, %v1086
      %v1104 = vsel %vm463, %v1096, %v1088
      %v1105 = vmul.f32 %v1101, %v478
      %v1106 = vmul.f32 %v1097, %v482
      %v1107 = vmul.f32 %v1102, %v478
      %v1108 = vmul.f32 %v1098, %v482
      %v1109 = vmul.f32 %v1103, %v478
      %v1110 = vmul.f32 %v1099, %v482
      %v1111 = vmul.f32 %v1104, %v478
      %v1112 = vmul.f32 %v1100, %v482
      %v1113 = vpack.c.bf16 %v1107, %v1105
      %v1114 = vpack.c.bf16 %v1108, %v1106
      %v1115 = vpack.c.bf16 %v1111, %v1109
      %v1116 = vpack.c.bf16 %v1112, %v1110
      %v1117 = vpack.c.bf16 %v958, %v956
      %v1118 = vpack.c.bf16 %v959, %v957
      %v1119 = vpack.c.bf16 %v962, %v960
      %v1120 = vpack.c.bf16 %v963, %v961
      %1121 = vrot.lane.b32.xlu0 %v956, 127
      %v1122 = vpop.permute.xlu0 %1121
      %1123 = vrot.lane.b32.xlu0 %v958, 127
      %v1124 = vpop.permute.xlu0 %1123
      %1125 = vrot.lane.b32.xlu0 %v960, 127
      %v1126 = vpop.permute.xlu0 %1125
      %1127 = vrot.lane.b32.xlu0 %v962, 127
      %v1128 = vpop.permute.xlu0 %1127
      %1129 = vrot.lane.b32.xlu0 %v957, 127
      %v1130 = vpop.permute.xlu0 %1129
      %1131 = vrot.lane.b32.xlu0 %v959, 127
      %v1132 = vpop.permute.xlu0 %1131
      %1133 = vrot.lane.b32.xlu0 %v961, 127
      %v1134 = vpop.permute.xlu0 %1133
      %1135 = vrot.lane.b32.xlu0 %v963, 127
      %v1136 = vpop.permute.xlu0 %1135
      %v1137 = vsel %vm517, %v1122, %v1130
      %v1138 = vsel %vm517, %v1124, %v1132
      %v1139 = vsel %vm517, %v1126, %v1134
      %v1140 = vsel %vm517, %v1128, %v1136
      %v1141 = vsel %vm517, %v1130, %v1122
      %v1142 = vsel %vm517, %v1132, %v1124
      %v1143 = vsel %vm517, %v1134, %v1126
      %v1144 = vsel %vm517, %v1136, %v1128
      %v1145 = vmul.f32 %v1137, %v532
      %v1146 = vmul.f32 %v1141, %v536
      %v1147 = vmul.f32 %v1138, %v532
      %v1148 = vmul.f32 %v1142, %v536
      %v1149 = vmul.f32 %v1139, %v532
      %v1150 = vmul.f32 %v1143, %v536
      %v1151 = vmul.f32 %v1140, %v532
      %v1152 = vmul.f32 %v1144, %v536
      %v1153 = vpack.c.bf16 %v1147, %v1145
      %v1154 = vpack.c.bf16 %v1148, %v1146
      %v1155 = vpack.c.bf16 %v1151, %v1149
      %v1156 = vpack.c.bf16 %v1152, %v1150
      %1157 = vrot.lane.b32.xlu0 %v956, 113
      %v1158 = vpop.permute.xlu0 %1157
      %1159 = vrot.lane.b32.xlu0 %v958, 113
      %v1160 = vpop.permute.xlu0 %1159
      %1161 = vrot.lane.b32.xlu0 %v960, 113
      %v1162 = vpop.permute.xlu0 %1161
      %1163 = vrot.lane.b32.xlu0 %v962, 113
      %v1164 = vpop.permute.xlu0 %1163
      %1165 = vrot.lane.b32.xlu0 %v957, 113
      %v1166 = vpop.permute.xlu0 %1165
      %1167 = vrot.lane.b32.xlu0 %v959, 113
      %v1168 = vpop.permute.xlu0 %1167
      %1169 = vrot.lane.b32.xlu0 %v961, 113
      %v1170 = vpop.permute.xlu0 %1169
      %1171 = vrot.lane.b32.xlu0 %v963, 113
      %v1172 = vpop.permute.xlu0 %1171
      %v1173 = vsel %vm567, %v1158, %v1166
      %v1174 = vsel %vm567, %v1160, %v1168
      %v1175 = vsel %vm567, %v1162, %v1170
      %v1176 = vsel %vm567, %v1164, %v1172
      %v1177 = vsel %vm567, %v1166, %v1158
      %v1178 = vsel %vm567, %v1168, %v1160
      %v1179 = vsel %vm567, %v1170, %v1162
      %v1180 = vsel %vm567, %v1172, %v1164
      %v1181 = vmul.f32 %v1173, %v582
      %v1182 = vmul.f32 %v1177, %v586
      %v1183 = vmul.f32 %v1174, %v582
      %v1184 = vmul.f32 %v1178, %v586
      %v1185 = vmul.f32 %v1175, %v582
      %v1186 = vmul.f32 %v1179, %v586
      %v1187 = vmul.f32 %v1176, %v582
      %v1188 = vmul.f32 %v1180, %v586
      %v1189 = vpack.c.bf16 %v1183, %v1181
      %v1190 = vpack.c.bf16 %v1184, %v1182
      %v1191 = vpack.c.bf16 %v1187, %v1185
      %v1192 = vpack.c.bf16 %v1188, %v1186
      %1193 = vrot.lane.b32.xlu0 %v956, 112
      %v1194 = vpop.permute.xlu0 %1193
      %1195 = vrot.lane.b32.xlu0 %v958, 112
      %v1196 = vpop.permute.xlu0 %1195
      %1197 = vrot.lane.b32.xlu0 %v960, 112
      %v1198 = vpop.permute.xlu0 %1197
      %1199 = vrot.lane.b32.xlu0 %v962, 112
      %v1200 = vpop.permute.xlu0 %1199
      %1201 = vrot.lane.b32.xlu0 %v957, 112
      %v1202 = vpop.permute.xlu0 %1201
      %1203 = vrot.lane.b32.xlu0 %v959, 112
      %v1204 = vpop.permute.xlu0 %1203
      %1205 = vrot.lane.b32.xlu0 %v961, 112
      %v1206 = vpop.permute.xlu0 %1205
      %1207 = vrot.lane.b32.xlu0 %v963, 112
      %v1208 = vpop.permute.xlu0 %1207
      %v1209 = vsel %vm617, %v1194, %v1202
      %v1210 = vsel %vm617, %v1196, %v1204
      %v1211 = vsel %vm617, %v1198, %v1206
      %v1212 = vsel %vm617, %v1200, %v1208
      %v1213 = vsel %vm617, %v1202, %v1194
      %v1214 = vsel %vm617, %v1204, %v1196
      %v1215 = vsel %vm617, %v1206, %v1198
      %v1216 = vsel %vm617, %v1208, %v1200
      %v1217 = vmul.f32 %v1209, %v632
      %v1218 = vmul.f32 %v1213, %v636
      %v1219 = vmul.f32 %v1210, %v632
      %v1220 = vmul.f32 %v1214, %v636
      %v1221 = vmul.f32 %v1211, %v632
      %v1222 = vmul.f32 %v1215, %v636
      %v1223 = vmul.f32 %v1212, %v632
      %v1224 = vmul.f32 %v1216, %v636
      %v1225 = vpack.c.bf16 %v1219, %v1217
      %v1226 = vpack.c.bf16 %v1220, %v1218
      %v1227 = vpack.c.bf16 %v1223, %v1221
      %v1228 = vpack.c.bf16 %v1224, %v1222
      %1229 = vrot.lane.b32.xlu0 %v956, 111
      %v1230 = vpop.permute.xlu0 %1229
      %1231 = vrot.lane.b32.xlu0 %v958, 111
      %v1232 = vpop.permute.xlu0 %1231
      %1233 = vrot.lane.b32.xlu0 %v960, 111
      %v1234 = vpop.permute.xlu0 %1233
      %1235 = vrot.lane.b32.xlu0 %v962, 111
      %v1236 = vpop.permute.xlu0 %1235
      %1237 = vrot.lane.b32.xlu0 %v957, 111
      %v1238 = vpop.permute.xlu0 %1237
      %1239 = vrot.lane.b32.xlu0 %v959, 111
      %v1240 = vpop.permute.xlu0 %1239
      %1241 = vrot.lane.b32.xlu0 %v961, 111
      %v1242 = vpop.permute.xlu0 %1241
      %1243 = vrot.lane.b32.xlu0 %v963, 111
      %v1244 = vpop.permute.xlu0 %1243
      %v1245 = vsel %vm667, %v1230, %v1238
      %v1246 = vsel %vm667, %v1232, %v1240
      %v1247 = vsel %vm667, %v1234, %v1242
      %v1248 = vsel %vm667, %v1236, %v1244
      %v1249 = vsel %vm667, %v1238, %v1230
      %v1250 = vsel %vm667, %v1240, %v1232
      %v1251 = vsel %vm667, %v1242, %v1234
      %v1252 = vsel %vm667, %v1244, %v1236
      %v1253 = vmul.f32 %v1245, %v682
      %v1254 = vmul.f32 %v1249, %v686
      %v1255 = vmul.f32 %v1246, %v682
      %v1256 = vmul.f32 %v1250, %v686
      %v1257 = vmul.f32 %v1247, %v682
      %v1258 = vmul.f32 %v1251, %v686
      %v1259 = vmul.f32 %v1248, %v682
      %v1260 = vmul.f32 %v1252, %v686
      %v1261 = vpack.c.bf16 %v1255, %v1253
      %v1262 = vpack.c.bf16 %v1256, %v1254
      %v1263 = vpack.c.bf16 %v1259, %v1257
      %v1264 = vpack.c.bf16 %v1260, %v1258
      %v1273 = vunpack.c.l.b16 %v965
      %v1274 = vunpack.c.h.b16 %v965
      %v1275 = vunpack.c.l.b16 %v966
      %v1276 = vunpack.c.l.b16 %v967
      %v1277 = vunpack.c.h.b16 %v967
      %v1278 = vunpack.c.l.b16 %v968
      %v1279 = vunpack.c.l.b16 %v969
      %v1280 = vunpack.c.h.b16 %v969
      %v1281 = vunpack.c.l.b16 %v970
      %v1282 = vunpack.c.l.b16 %v971
      %v1283 = vunpack.c.h.b16 %v971
      %v1284 = vunpack.c.l.b16 %v972
      %v1285 = vpack.c.b16 %v1276, %v1273
      %v1286 = vpack.c.b16 %v1277, %v1274
      %v1287 = vpack.c.b16 %v1278, %v1275
      %v1288 = vpack.c.b16 %v1282, %v1279
      %v1289 = vpack.c.b16 %v1283, %v1280
      %v1290 = vpack.c.b16 %v1284, %v1281
      %v1296 = vsel %vm731, %v1287, 0
      %v1299 = vsel %vm731, %v1290, 0
      %1301 = vmatprep.subr.bf16.mxu0 %v1006
      %1302 = vmatpush1.bf16.msra.mxu0 %v1005
      %1303 = vmatprep.subr.bf16.mxu0 %v1008
      %1304 = vmatpush1.bf16.msra.mxu0 %v1007
      %1305 = vmatprep.subr.bf16.mxu0 %v1042
      %1306 = vmatpush1.bf16.msra.mxu0 %v1041
      %1307 = vmatprep.subr.bf16.mxu0 %v1044
      %1308 = vmatpush1.bf16.msra.mxu0 %v1043
      %1309 = vmatprep.subr.bf16.mxu0 %v1078
      %1310 = vmatpush1.bf16.msra.mxu0 %v1077
      %1311 = vmatprep.subr.bf16.mxu0 %v1080
      %1312 = vmatpush1.bf16.msra.mxu0 %v1079
      %1313 = vmatprep.subr.bf16.mxu0 %v1114
      %1314 = vmatpush1.bf16.msra.mxu0 %v1113
      %1315 = vmatprep.subr.bf16.mxu0 %v1116
      %1316 = vmatpush1.bf16.msra.mxu0 %v1115
      %1317 = vmatprep.subr.bf16.mxu0 %v1118
      %1318 = vmatpush1.bf16.msra.mxu0 %v1117
      %1319 = vmatprep.subr.bf16.mxu0 %v1120
      %1320 = vmatpush1.bf16.msra.mxu0 %v1119
      %1321 = vmatprep.subr.bf16.mxu0 %v1154
      %1322 = vmatpush1.bf16.msra.mxu0 %v1153
      %1323 = vmatprep.subr.bf16.mxu0 %v1156
      %1324 = vmatpush1.bf16.msra.mxu0 %v1155
      %1325 = vmatprep.subr.bf16.mxu0 %v1190
      %1326 = vmatpush1.bf16.msra.mxu0 %v1189
      %1327 = vmatprep.subr.bf16.mxu0 %v1192
      %1328 = vmatpush1.bf16.msra.mxu0 %v1191
      %1329 = vmatprep.subr.bf16.mxu0 %v1226
      %1330 = vmatpush1.bf16.msra.mxu0 %v1225
      %1331 = vmatprep.subr.bf16.mxu0 %v1228
      %1332 = vmatpush1.bf16.msra.mxu0 %v1227
      %1333 = vmatprep.mubr.bf16.mxu0 %v1286
      %1334 = vmatmul.mubr.bf16.gmra.mrb[0].mxu0 %v1285
      %v1335 = vpop.f32.mrb[0].mxu0
      %v1336 = vadd.f32 0.0, %v1335
      %v1337 = vpop.f32.mrb[0].mxu0
      %v1338 = vadd.f32 0.0, %v1337
      %v1339 = vpop.f32.mrb[0].mxu0
      %v1340 = vadd.f32 0.0, %v1339
      %v1341 = vpop.f32.mrb[0].mxu0
      %v1342 = vadd.f32 0.0, %v1341
      %1343 = vmatprep.mubr.bf16.mxu0 %v1289
      %1344 = vmatmul.mubr.bf16.gmra.mrb[0].mxu0 %v1288
      %v1345 = vpop.f32.mrb[0].mxu0
      %v1346 = vadd.f32 0.0, %v1345
      %v1347 = vpop.f32.mrb[0].mxu0
      %v1348 = vadd.f32 0.0, %v1347
      %v1349 = vpop.f32.mrb[0].mxu0
      %v1350 = vadd.f32 0.0, %v1349
      %v1351 = vpop.f32.mrb[0].mxu0
      %v1352 = vadd.f32 0.0, %v1351
      %1353 = vdwg.mxu0
      %1354 = vmatprep.subr.bf16.mxu0 %v1262
      %1355 = vmatpush1.bf16.msra.mxu0 %v1261
      %1356 = vmatprep.subr.bf16.mxu0 %v1264
      %1357 = vmatpush1.bf16.msra.mxu0 %v1263
      %1358 = vmatprep.subr.bf16.mxu0 0
      %1359 = vmatpush1.bf16.msra.mxu0 0
      %1360 = vmatprep.subr.bf16.mxu0 0
      %1361 = vmatpush1.bf16.msra.mxu0 0
      %1362 = vmatprep.subr.bf16.mxu0 0
      %1363 = vmatpush1.bf16.msra.mxu0 0
      %1364 = vmatprep.subr.bf16.mxu0 0
      %1365 = vmatpush1.bf16.msra.mxu0 0
      %1366 = vmatprep.subr.bf16.mxu0 0
      %1367 = vmatpush1.bf16.msra.mxu0 0
      %1368 = vmatprep.subr.bf16.mxu0 0
      %1369 = vmatpush1.bf16.msra.mxu0 0
      %1370 = vmatprep.subr.bf16.mxu0 0
      %1371 = vmatpush1.bf16.msra.mxu0 0
      %1372 = vmatprep.subr.bf16.mxu0 0
      %1373 = vmatpush1.bf16.msra.mxu0 0
      %1374 = vmatprep.subr.bf16.mxu0 0
      %1375 = vmatpush1.bf16.msra.mxu0 0
      %1376 = vmatprep.subr.bf16.mxu0 0
      %1377 = vmatpush1.bf16.msra.mxu0 0
      %1378 = vmatprep.subr.bf16.mxu0 0
      %1379 = vmatpush1.bf16.msra.mxu0 0
      %1380 = vmatprep.subr.bf16.mxu0 0
      %1381 = vmatpush1.bf16.msra.mxu0 0
      %1382 = vmatprep.subr.bf16.mxu0 0
      %1383 = vmatpush1.bf16.msra.mxu0 0
      %1384 = vmatprep.subr.bf16.mxu0 0
      %1385 = vmatpush1.bf16.msra.mxu0 0
      %1386 = vmatprep.mubr.bf16.mxu0 0
      %1387 = vmatmul.mubr.bf16.gmra.mrb[0].mxu0 %v1296
      %v1388 = vpop.f32.mrb[0].mxu0
      %v1389 = vadd.f32 %v1336, %v1388
      %v1390 = vpop.f32.mrb[0].mxu0
      %v1391 = vadd.f32 %v1338, %v1390
      %v1392 = vpop.f32.mrb[0].mxu0
      %v1393 = vadd.f32 %v1340, %v1392
      %v1394 = vpop.f32.mrb[0].mxu0
      %v1395 = vadd.f32 %v1342, %v1394
      %1396 = vmatprep.mubr.bf16.mxu0 0
      %1397 = vmatmul.mubr.bf16.gmra.mrb[0].mxu0 %v1299
      %v1398 = vpop.f32.mrb[0].mxu0
      %v1399 = vadd.f32 %v1346, %v1398
      %v1400 = vpop.f32.mrb[0].mxu0
      %v1401 = vadd.f32 %v1348, %v1400
      %v1402 = vpop.f32.mrb[0].mxu0
      %v1403 = vadd.f32 %v1350, %v1402
      %v1404 = vpop.f32.mrb[0].mxu0
      %v1405 = vadd.f32 %v1352, %v1404
      %1406 = vdwg.mxu0
      %s1407 = scalar_lea.vmem %s3, 32
      %v1408 = vld [vmem:[%s1407] sm:$0xff]
      %v1409 = vld [vmem:[%s1407 + $0x8] sm:$0xff]
      %v1410 = vld [vmem:[%s1407 + $0x10] sm:$0xff]
      %v1411 = vld [vmem:[%s1407 + $0x18] sm:$0xff]
      %1413 = vset.pattern.permute.xlu0 0
      %1414 = vperm.xlu0 %1413, %v1408
      %v1415 = vpop.permute.xlu0 %1414
      %1418 = vset.pattern.permute.xlu0 0
      %1419 = vperm.xlu0 %1418, %v1409
      %v1420 = vpop.permute.xlu0 %1419
      %1423 = vset.pattern.permute.xlu0 0
      %1424 = vperm.xlu0 %1423, %v1410
      %v1425 = vpop.permute.xlu0 %1424
      %1428 = vset.pattern.permute.xlu0 0
      %1429 = vperm.xlu0 %1428, %v1411
      %v1430 = vpop.permute.xlu0 %1429
      %v1432 = vmul.f32 %v1389, %v1415
      %v1433 = vmul.f32 %v1391, %v1415
      %v1434 = vmul.f32 %v1393, %v1420
      %v1435 = vmul.f32 %v1395, %v1420
      %v1436 = vmul.f32 %v1399, %v1425
      %v1437 = vmul.f32 %v1401, %v1425
      %v1438 = vmul.f32 %v1403, %v1430
      %v1439 = vmul.f32 %v1405, %v1430
      %s1440 = scalar_lea.vmem %s4, 32
      %v1441 = vld [vmem:[%s1440] sm:$0xff]
      %v1442 = vld [vmem:[%s1440 + $0x8] sm:$0xff]
      %v1443 = vld [vmem:[%s1440 + $0x10] sm:$0xff]
      %v1444 = vld [vmem:[%s1440 + $0x18] sm:$0xff]
      %1446 = vset.pattern.permute.xlu0 0
      %1447 = vperm.xlu0 %1446, %v1441
      %v1448 = vpop.permute.xlu0 %1447
      %1451 = vset.pattern.permute.xlu0 0
      %1452 = vperm.xlu0 %1451, %v1442
      %v1453 = vpop.permute.xlu0 %1452
      %1456 = vset.pattern.permute.xlu0 0
      %1457 = vperm.xlu0 %1456, %v1443
      %v1458 = vpop.permute.xlu0 %1457
      %1461 = vset.pattern.permute.xlu0 0
      %1462 = vperm.xlu0 %1461, %v1444
      %v1463 = vpop.permute.xlu0 %1462
      %v1465 = vadd.f32 %v1432, %v1448
      %v1466 = vadd.f32 %v1433, %v1448
      %v1467 = vadd.f32 %v1434, %v1453
      %v1468 = vadd.f32 %v1435, %v1453
      %v1469 = vadd.f32 %v1436, %v1458
      %v1470 = vadd.f32 %v1437, %v1458
      %v1471 = vadd.f32 %v1438, %v1463
      %v1472 = vadd.f32 %v1439, %v1463
      %v1473 = vxor.u32 %v1465, 2147483648
      %v1474 = vxor.u32 %v1466, 2147483648
      %v1475 = vxor.u32 %v1467, 2147483648
      %v1476 = vxor.u32 %v1468, 2147483648
      %v1477 = vxor.u32 %v1469, 2147483648
      %v1478 = vxor.u32 %v1470, 2147483648
      %v1479 = vxor.u32 %v1471, 2147483648
      %v1480 = vxor.u32 %v1472, 2147483648
      %v1481 = vmul.f32 %v1473, 1.442695
      %v1482 = vpow.pop %v1481
      %v1483 = vmul.f32 %v1474, 1.442695
      %v1484 = vpow.pop %v1483
      %v1485 = vmul.f32 %v1475, 1.442695
      %v1486 = vpow.pop %v1485
      %v1487 = vmul.f32 %v1476, 1.442695
      %v1488 = vpow.pop %v1487
      %v1489 = vmul.f32 %v1477, 1.442695
      %v1490 = vpow.pop %v1489
      %v1491 = vmul.f32 %v1478, 1.442695
      %v1492 = vpow.pop %v1491
      %v1493 = vmul.f32 %v1479, 1.442695
      %v1494 = vpow.pop %v1493
      %v1495 = vmul.f32 %v1480, 1.442695
      %v1496 = vpow.pop %v1495
      %v1497 = vadd.f32 %v1482, 1.0
      %v1498 = vadd.f32 %v1484, 1.0
      %v1499 = vadd.f32 %v1486, 1.0
      %v1500 = vadd.f32 %v1488, 1.0
      %v1501 = vadd.f32 %v1490, 1.0
      %v1502 = vadd.f32 %v1492, 1.0
      %v1503 = vadd.f32 %v1494, 1.0
      %v1504 = vadd.f32 %v1496, 1.0
      %v1505 = vrcp.pop %v1497
      %v1506 = vmul.f32 1.0, %v1505
      %v1507 = vrcp.pop %v1498
      %v1508 = vmul.f32 1.0, %v1507
      %v1509 = vrcp.pop %v1499
      %v1510 = vmul.f32 1.0, %v1509
      %v1511 = vrcp.pop %v1500
      %v1512 = vmul.f32 1.0, %v1511
      %v1513 = vrcp.pop %v1501
      %v1514 = vmul.f32 1.0, %v1513
      %v1515 = vrcp.pop %v1502
      %v1516 = vmul.f32 1.0, %v1515
      %v1517 = vrcp.pop %v1503
      %v1518 = vmul.f32 1.0, %v1517
      %v1519 = vrcp.pop %v1504
      %v1520 = vmul.f32 1.0, %v1519
      %v1521 = vmul.f32 %v1465, %v1506
      %v1522 = vmul.f32 %v1466, %v1508
      %v1523 = vmul.f32 %v1467, %v1510
      %v1524 = vmul.f32 %v1468, %v1512
      %v1525 = vmul.f32 %v1469, %v1514
      %v1526 = vmul.f32 %v1470, %v1516
      %v1527 = vmul.f32 %v1471, %v1518
      %v1528 = vmul.f32 %v1472, %v1520
      %v1529 = vld [vmem:[%s5] sm:$0xff]
      %v1530 = vld [vmem:[%s5 + $0x8] sm:$0xf]
      %v1531 = vld [vmem:[%s5 + $0xc] sm:$0xff]
      %v1532 = vld [vmem:[%s5 + $0x14] sm:$0xf]
      %v1533 = vld [vmem:[%s5 + $0x18] sm:$0xff]
      %v1534 = vld [vmem:[%s5 + $0x20] sm:$0xf]
      %v1535 = vld [vmem:[%s5 + $0x24] sm:$0xff]
      %v1536 = vld [vmem:[%s5 + $0x2c] sm:$0xf]
      %v1537 = vld [vmem:[%s5 + $0x30] sm:$0xff]
      %v1538 = vld [vmem:[%s5 + $0x38] sm:$0xf]
      %v1539 = vld [vmem:[%s5 + $0x3c] sm:$0xff]
      %v1540 = vld [vmem:[%s5 + $0x44] sm:$0xf]
      %v1541 = vld [vmem:[%s5 + $0x48] sm:$0xff]
      %v1542 = vld [vmem:[%s5 + $0x50] sm:$0xf]
      %v1543 = vld [vmem:[%s5 + $0x54] sm:$0xff]
      %v1544 = vld [vmem:[%s5 + $0x5c] sm:$0xf]
      %v1545 = vld [vmem:[%s5 + $0x60] sm:$0xff]
      %v1546 = vld [vmem:[%s5 + $0x68] sm:$0xf]
      %v1547 = vld [vmem:[%s5 + $0x6c] sm:$0xff]
      %v1548 = vld [vmem:[%s5 + $0x74] sm:$0xf]
      %v1549 = vld [vmem:[%s5 + $0x78] sm:$0xff]
      %v1550 = vld [vmem:[%s5 + $0x80] sm:$0xf]
      %v1551 = vld [vmem:[%s5 + $0x84] sm:$0xff]
      %v1552 = vld [vmem:[%s5 + $0x8c] sm:$0xf]
      %v1553 = vld [vmem:[%s5 + $0x90] sm:$0xff]
      %v1554 = vld [vmem:[%s5 + $0x98] sm:$0xf]
      %v1555 = vld [vmem:[%s5 + $0x9c] sm:$0xff]
      %v1556 = vld [vmem:[%s5 + $0xa4] sm:$0xf]
      %v1557 = vld [vmem:[%s5 + $0xa8] sm:$0xff]
      %v1558 = vld [vmem:[%s5 + $0xb0] sm:$0xf]
      %v1559 = vld [vmem:[%s5 + $0xb4] sm:$0xff]
      %v1560 = vld [vmem:[%s5 + $0xbc] sm:$0xf]
      %1561 = vrot.lane.b32.xlu0 %v1521, 17
      %v1562 = vpop.permute.xlu0 %1561
      %1563 = vrot.lane.b32.xlu0 %v1523, 17
      %v1564 = vpop.permute.xlu0 %1563
      %1565 = vrot.lane.b32.xlu0 %v1525, 17
      %v1566 = vpop.permute.xlu0 %1565
      %1567 = vrot.lane.b32.xlu0 %v1527, 17
      %v1568 = vpop.permute.xlu0 %1567
      %1569 = vrot.lane.b32.xlu0 %v1522, 17
      %v1570 = vpop.permute.xlu0 %1569
      %1571 = vrot.lane.b32.xlu0 %v1524, 17
      %v1572 = vpop.permute.xlu0 %1571
      %1573 = vrot.lane.b32.xlu0 %v1526, 17
      %v1574 = vpop.permute.xlu0 %1573
      %1575 = vrot.lane.b32.xlu0 %v1528, 17
      %v1576 = vpop.permute.xlu0 %1575
      %v1577 = vsel %vm314, %v1562, %v1570
      %v1578 = vsel %vm314, %v1564, %v1572
      %v1579 = vsel %vm314, %v1566, %v1574
      %v1580 = vsel %vm314, %v1568, %v1576
      %v1581 = vsel %vm314, %v1570, %v1562
      %v1582 = vsel %vm314, %v1572, %v1564
      %v1583 = vsel %vm314, %v1574, %v1566
      %v1584 = vsel %vm314, %v1576, %v1568
      %v1585 = vmul.f32 %v1581, %v328
      %v1586 = vmul.f32 %v1577, %v332
      %v1587 = vmul.f32 %v1582, %v328
      %v1588 = vmul.f32 %v1578, %v332
      %v1589 = vmul.f32 %v1583, %v328
      %v1590 = vmul.f32 %v1579, %v332
      %v1591 = vmul.f32 %v1584, %v328
      %v1592 = vmul.f32 %v1580, %v332
      %v1593 = vpack.c.bf16 %v1587, %v1585
      %v1594 = vpack.c.bf16 %v1588, %v1586
      %v1595 = vpack.c.bf16 %v1591, %v1589
      %v1596 = vpack.c.bf16 %v1592, %v1590
      %1597 = vrot.lane.b32.xlu0 %v1521, 16
      %v1598 = vpop.permute.xlu0 %1597
      %1599 = vrot.lane.b32.xlu0 %v1523, 16
      %v1600 = vpop.permute.xlu0 %1599
      %1601 = vrot.lane.b32.xlu0 %v1525, 16
      %v1602 = vpop.permute.xlu0 %1601
      %1603 = vrot.lane.b32.xlu0 %v1527, 16
      %v1604 = vpop.permute.xlu0 %1603
      %1605 = vrot.lane.b32.xlu0 %v1522, 16
      %v1606 = vpop.permute.xlu0 %1605
      %1607 = vrot.lane.b32.xlu0 %v1524, 16
      %v1608 = vpop.permute.xlu0 %1607
      %1609 = vrot.lane.b32.xlu0 %v1526, 16
      %v1610 = vpop.permute.xlu0 %1609
      %1611 = vrot.lane.b32.xlu0 %v1528, 16
      %v1612 = vpop.permute.xlu0 %1611
      %v1613 = vsel %vm363, %v1598, %v1606
      %v1614 = vsel %vm363, %v1600, %v1608
      %v1615 = vsel %vm363, %v1602, %v1610
      %v1616 = vsel %vm363, %v1604, %v1612
      %v1617 = vsel %vm363, %v1606, %v1598
      %v1618 = vsel %vm363, %v1608, %v1600
      %v1619 = vsel %vm363, %v1610, %v1602
      %v1620 = vsel %vm363, %v1612, %v1604
      %v1621 = vmul.f32 %v1617, %v378
      %v1622 = vmul.f32 %v1613, %v382
      %v1623 = vmul.f32 %v1618, %v378
      %v1624 = vmul.f32 %v1614, %v382
      %v1625 = vmul.f32 %v1619, %v378
      %v1626 = vmul.f32 %v1615, %v382
      %v1627 = vmul.f32 %v1620, %v378
      %v1628 = vmul.f32 %v1616, %v382
      %v1629 = vpack.c.bf16 %v1623, %v1621
      %v1630 = vpack.c.bf16 %v1624, %v1622
      %v1631 = vpack.c.bf16 %v1627, %v1625
      %v1632 = vpack.c.bf16 %v1628, %v1626
      %1633 = vrot.lane.b32.xlu0 %v1521, 15
      %v1634 = vpop.permute.xlu0 %1633
      %1635 = vrot.lane.b32.xlu0 %v1523, 15
      %v1636 = vpop.permute.xlu0 %1635
      %1637 = vrot.lane.b32.xlu0 %v1525, 15
      %v1638 = vpop.permute.xlu0 %1637
      %1639 = vrot.lane.b32.xlu0 %v1527, 15
      %v1640 = vpop.permute.xlu0 %1639
      %1641 = vrot.lane.b32.xlu0 %v1522, 15
      %v1642 = vpop.permute.xlu0 %1641
      %1643 = vrot.lane.b32.xlu0 %v1524, 15
      %v1644 = vpop.permute.xlu0 %1643
      %1645 = vrot.lane.b32.xlu0 %v1526, 15
      %v1646 = vpop.permute.xlu0 %1645
      %1647 = vrot.lane.b32.xlu0 %v1528, 15
      %v1648 = vpop.permute.xlu0 %1647
      %v1649 = vsel %vm413, %v1634, %v1642
      %v1650 = vsel %vm413, %v1636, %v1644
      %v1651 = vsel %vm413, %v1638, %v1646
      %v1652 = vsel %vm413, %v1640, %v1648
      %v1653 = vsel %vm413, %v1642, %v1634
      %v1654 = vsel %vm413, %v1644, %v1636
      %v1655 = vsel %vm413, %v1646, %v1638
      %v1656 = vsel %vm413, %v1648, %v1640
      %v1657 = vmul.f32 %v1653, %v428
      %v1658 = vmul.f32 %v1649, %v432
      %v1659 = vmul.f32 %v1654, %v428
      %v1660 = vmul.f32 %v1650, %v432
      %v1661 = vmul.f32 %v1655, %v428
      %v1662 = vmul.f32 %v1651, %v432
      %v1663 = vmul.f32 %v1656, %v428
      %v1664 = vmul.f32 %v1652, %v432
      %v1665 = vpack.c.bf16 %v1659, %v1657
      %v1666 = vpack.c.bf16 %v1660, %v1658
      %v1667 = vpack.c.bf16 %v1663, %v1661
      %v1668 = vpack.c.bf16 %v1664, %v1662
      %1669 = vrot.lane.b32.xlu0 %v1521, 1
      %v1670 = vpop.permute.xlu0 %1669
      %1671 = vrot.lane.b32.xlu0 %v1523, 1
      %v1672 = vpop.permute.xlu0 %1671
      %1673 = vrot.lane.b32.xlu0 %v1525, 1
      %v1674 = vpop.permute.xlu0 %1673
      %1675 = vrot.lane.b32.xlu0 %v1527, 1
      %v1676 = vpop.permute.xlu0 %1675
      %1677 = vrot.lane.b32.xlu0 %v1522, 1
      %v1678 = vpop.permute.xlu0 %1677
      %1679 = vrot.lane.b32.xlu0 %v1524, 1
      %v1680 = vpop.permute.xlu0 %1679
      %1681 = vrot.lane.b32.xlu0 %v1526, 1
      %v1682 = vpop.permute.xlu0 %1681
      %1683 = vrot.lane.b32.xlu0 %v1528, 1
      %v1684 = vpop.permute.xlu0 %1683
      %v1685 = vsel %vm463, %v1670, %v1678
      %v1686 = vsel %vm463, %v1672, %v1680
      %v1687 = vsel %vm463, %v1674, %v1682
      %v1688 = vsel %vm463, %v1676, %v1684
      %v1689 = vsel %vm463, %v1678, %v1670
      %v1690 = vsel %vm463, %v1680, %v1672
      %v1691 = vsel %vm463, %v1682, %v1674
      %v1692 = vsel %vm463, %v1684, %v1676
      %v1693 = vmul.f32 %v1689, %v478
      %v1694 = vmul.f32 %v1685, %v482
      %v1695 = vmul.f32 %v1690, %v478
      %v1696 = vmul.f32 %v1686, %v482
      %v1697 = vmul.f32 %v1691, %v478
      %v1698 = vmul.f32 %v1687, %v482
      %v1699 = vmul.f32 %v1692, %v478
      %v1700 = vmul.f32 %v1688, %v482
      %v1701 = vpack.c.bf16 %v1695, %v1693
      %v1702 = vpack.c.bf16 %v1696, %v1694
      %v1703 = vpack.c.bf16 %v1699, %v1697
      %v1704 = vpack.c.bf16 %v1700, %v1698
      %v1705 = vpack.c.bf16 %v1523, %v1521
      %v1706 = vpack.c.bf16 %v1524, %v1522
      %v1707 = vpack.c.bf16 %v1527, %v1525
      %v1708 = vpack.c.bf16 %v1528, %v1526
      %1709 = vrot.lane.b32.xlu0 %v1521, 127
      %v1710 = vpop.permute.xlu0 %1709
      %1711 = vrot.lane.b32.xlu0 %v1523, 127
      %v1712 = vpop.permute.xlu0 %1711
      %1713 = vrot.lane.b32.xlu0 %v1525, 127
      %v1714 = vpop.permute.xlu0 %1713
      %1715 = vrot.lane.b32.xlu0 %v1527, 127
      %v1716 = vpop.permute.xlu0 %1715
      %1717 = vrot.lane.b32.xlu0 %v1522, 127
      %v1718 = vpop.permute.xlu0 %1717
      %1719 = vrot.lane.b32.xlu0 %v1524, 127
      %v1720 = vpop.permute.xlu0 %1719
      %1721 = vrot.lane.b32.xlu0 %v1526, 127
      %v1722 = vpop.permute.xlu0 %1721
      %1723 = vrot.lane.b32.xlu0 %v1528, 127
      %v1724 = vpop.permute.xlu0 %1723
      %v1725 = vsel %vm517, %v1710, %v1718
      %v1726 = vsel %vm517, %v1712, %v1720
      %v1727 = vsel %vm517, %v1714, %v1722
      %v1728 = vsel %vm517, %v1716, %v1724
      %v1729 = vsel %vm517, %v1718, %v1710
      %v1730 = vsel %vm517, %v1720, %v1712
      %v1731 = vsel %vm517, %v1722, %v1714
      %v1732 = vsel %vm517, %v1724, %v1716
      %v1733 = vmul.f32 %v1725, %v532
      %v1734 = vmul.f32 %v1729, %v536
      %v1735 = vmul.f32 %v1726, %v532
      %v1736 = vmul.f32 %v1730, %v536
      %v1737 = vmul.f32 %v1727, %v532
      %v1738 = vmul.f32 %v1731, %v536
      %v1739 = vmul.f32 %v1728, %v532
      %v1740 = vmul.f32 %v1732, %v536
      %v1741 = vpack.c.bf16 %v1735, %v1733
      %v1742 = vpack.c.bf16 %v1736, %v1734
      %v1743 = vpack.c.bf16 %v1739, %v1737
      %v1744 = vpack.c.bf16 %v1740, %v1738
      %1745 = vrot.lane.b32.xlu0 %v1521, 113
      %v1746 = vpop.permute.xlu0 %1745
      %1747 = vrot.lane.b32.xlu0 %v1523, 113
      %v1748 = vpop.permute.xlu0 %1747
      %1749 = vrot.lane.b32.xlu0 %v1525, 113
      %v1750 = vpop.permute.xlu0 %1749
      %1751 = vrot.lane.b32.xlu0 %v1527, 113
      %v1752 = vpop.permute.xlu0 %1751
      %1753 = vrot.lane.b32.xlu0 %v1522, 113
      %v1754 = vpop.permute.xlu0 %1753
      %1755 = vrot.lane.b32.xlu0 %v1524, 113
      %v1756 = vpop.permute.xlu0 %1755
      %1757 = vrot.lane.b32.xlu0 %v1526, 113
      %v1758 = vpop.permute.xlu0 %1757
      %1759 = vrot.lane.b32.xlu0 %v1528, 113
      %v1760 = vpop.permute.xlu0 %1759
      %v1761 = vsel %vm567, %v1746, %v1754
      %v1762 = vsel %vm567, %v1748, %v1756
      %v1763 = vsel %vm567, %v1750, %v1758
      %v1764 = vsel %vm567, %v1752, %v1760
      %v1765 = vsel %vm567, %v1754, %v1746
      %v1766 = vsel %vm567, %v1756, %v1748
      %v1767 = vsel %vm567, %v1758, %v1750
      %v1768 = vsel %vm567, %v1760, %v1752
      %v1769 = vmul.f32 %v1761, %v582
      %v1770 = vmul.f32 %v1765, %v586
      %v1771 = vmul.f32 %v1762, %v582
      %v1772 = vmul.f32 %v1766, %v586
      %v1773 = vmul.f32 %v1763, %v582
      %v1774 = vmul.f32 %v1767, %v586
      %v1775 = vmul.f32 %v1764, %v582
      %v1776 = vmul.f32 %v1768, %v586
      %v1777 = vpack.c.bf16 %v1771, %v1769
      %v1778 = vpack.c.bf16 %v1772, %v1770
      %v1779 = vpack.c.bf16 %v1775, %v1773
      %v1780 = vpack.c.bf16 %v1776, %v1774
      %1781 = vrot.lane.b32.xlu0 %v1521, 112
      %v1782 = vpop.permute.xlu0 %1781
      %1783 = vrot.lane.b32.xlu0 %v1523, 112
      %v1784 = vpop.permute.xlu0 %1783
      %1785 = vrot.lane.b32.xlu0 %v1525, 112
      %v1786 = vpop.permute.xlu0 %1785
      %1787 = vrot.lane.b32.xlu0 %v1527, 112
      %v1788 = vpop.permute.xlu0 %1787
      %1789 = vrot.lane.b32.xlu0 %v1522, 112
      %v1790 = vpop.permute.xlu0 %1789
      %1791 = vrot.lane.b32.xlu0 %v1524, 112
      %v1792 = vpop.permute.xlu0 %1791
      %1793 = vrot.lane.b32.xlu0 %v1526, 112
      %v1794 = vpop.permute.xlu0 %1793
      %1795 = vrot.lane.b32.xlu0 %v1528, 112
      %v1796 = vpop.permute.xlu0 %1795
      %v1797 = vsel %vm617, %v1782, %v1790
      %v1798 = vsel %vm617, %v1784, %v1792
      %v1799 = vsel %vm617, %v1786, %v1794
      %v1800 = vsel %vm617, %v1788, %v1796
      %v1801 = vsel %vm617, %v1790, %v1782
      %v1802 = vsel %vm617, %v1792, %v1784
      %v1803 = vsel %vm617, %v1794, %v1786
      %v1804 = vsel %vm617, %v1796, %v1788
      %v1805 = vmul.f32 %v1797, %v632
      %v1806 = vmul.f32 %v1801, %v636
      %v1807 = vmul.f32 %v1798, %v632
      %v1808 = vmul.f32 %v1802, %v636
      %v1809 = vmul.f32 %v1799, %v632
      %v1810 = vmul.f32 %v1803, %v636
      %v1811 = vmul.f32 %v1800, %v632
      %v1812 = vmul.f32 %v1804, %v636
      %v1813 = vpack.c.bf16 %v1807, %v1805
      %v1814 = vpack.c.bf16 %v1808, %v1806
      %v1815 = vpack.c.bf16 %v1811, %v1809
      %v1816 = vpack.c.bf16 %v1812, %v1810
      %1817 = vrot.lane.b32.xlu0 %v1521, 111
      %v1818 = vpop.permute.xlu0 %1817
      %1819 = vrot.lane.b32.xlu0 %v1523, 111
      %v1820 = vpop.permute.xlu0 %1819
      %1821 = vrot.lane.b32.xlu0 %v1525, 111
      %v1822 = vpop.permute.xlu0 %1821
      %1823 = vrot.lane.b32.xlu0 %v1527, 111
      %v1824 = vpop.permute.xlu0 %1823
      %1825 = vrot.lane.b32.xlu0 %v1522, 111
      %v1826 = vpop.permute.xlu0 %1825
      %1827 = vrot.lane.b32.xlu0 %v1524, 111
      %v1828 = vpop.permute.xlu0 %1827
      %1829 = vrot.lane.b32.xlu0 %v1526, 111
      %v1830 = vpop.permute.xlu0 %1829
      %1831 = vrot.lane.b32.xlu0 %v1528, 111
      %v1832 = vpop.permute.xlu0 %1831
      %v1833 = vsel %vm667, %v1818, %v1826
      %v1834 = vsel %vm667, %v1820, %v1828
      %v1835 = vsel %vm667, %v1822, %v1830
      %v1836 = vsel %vm667, %v1824, %v1832
      %v1837 = vsel %vm667, %v1826, %v1818
      %v1838 = vsel %vm667, %v1828, %v1820
      %v1839 = vsel %vm667, %v1830, %v1822
      %v1840 = vsel %vm667, %v1832, %v1824
      %v1841 = vmul.f32 %v1833, %v682
      %v1842 = vmul.f32 %v1837, %v686
      %v1843 = vmul.f32 %v1834, %v682
      %v1844 = vmul.f32 %v1838, %v686
      %v1845 = vmul.f32 %v1835, %v682
      %v1846 = vmul.f32 %v1839, %v686
      %v1847 = vmul.f32 %v1836, %v682
      %v1848 = vmul.f32 %v1840, %v686
      %v1849 = vpack.c.bf16 %v1843, %v1841
      %v1850 = vpack.c.bf16 %v1844, %v1842
      %v1851 = vpack.c.bf16 %v1847, %v1845
      %v1852 = vpack.c.bf16 %v1848, %v1846
      %v1853 = vld [vmem:[%s6] sm:$0xff]
      %v1854 = vld [vmem:[%s6 + $0x8] sm:$0xff]
      %v1855 = vld [vmem:[%s6 + $0x10] sm:$0xff]
      %v1856 = vld [vmem:[%s6 + $0x18] sm:$0xff]
      %v1857 = vld [vmem:[%s6 + $0x20] sm:$0xff]
      %v1858 = vld [vmem:[%s6 + $0x28] sm:$0xff]
      %v1859 = vld [vmem:[%s6 + $0x30] sm:$0xff]
      %v1860 = vld [vmem:[%s6 + $0x38] sm:$0xff]
      %v1861 = vld [vmem:[%s6 + $0x40] sm:$0xff]
      %v1862 = vld [vmem:[%s6 + $0x48] sm:$0xff]
      %v1863 = vld [vmem:[%s6 + $0x50] sm:$0xff]
      %v1864 = vld [vmem:[%s6 + $0x58] sm:$0xff]
      %v1865 = vld [vmem:[%s6 + $0x60] sm:$0xff]
      %v1866 = vld [vmem:[%s6 + $0x68] sm:$0xff]
      %v1867 = vld [vmem:[%s6 + $0x70] sm:$0xff]
      %v1868 = vld [vmem:[%s6 + $0x78] sm:$0xff]
      %1870 = vset.pattern.permute.xlu0 0
      %1871 = vperm.xlu0 %1870, %v1853
      %v1872 = vpop.permute.xlu0 %1871
      %1875 = vset.pattern.permute.xlu0 0
      %1876 = vperm.xlu0 %1875, %v1854
      %v1877 = vpop.permute.xlu0 %1876
      %1880 = vset.pattern.permute.xlu0 0
      %1881 = vperm.xlu0 %1880, %v1855
      %v1882 = vpop.permute.xlu0 %1881
      %1885 = vset.pattern.permute.xlu0 0
      %1886 = vperm.xlu0 %1885, %v1856
      %v1887 = vpop.permute.xlu0 %1886
      %1890 = vset.pattern.permute.xlu0 0
      %1891 = vperm.xlu0 %1890, %v1857
      %v1892 = vpop.permute.xlu0 %1891
      %1895 = vset.pattern.permute.xlu0 0
      %1896 = vperm.xlu0 %1895, %v1858
      %v1897 = vpop.permute.xlu0 %1896
      %1900 = vset.pattern.permute.xlu0 0
      %1901 = vperm.xlu0 %1900, %v1859
      %v1902 = vpop.permute.xlu0 %1901
      %1905 = vset.pattern.permute.xlu0 0
      %1906 = vperm.xlu0 %1905, %v1860
      %v1907 = vpop.permute.xlu0 %1906
      %1910 = vset.pattern.permute.xlu0 0
      %1911 = vperm.xlu0 %1910, %v1861
      %v1912 = vpop.permute.xlu0 %1911
      %1915 = vset.pattern.permute.xlu0 0
      %1916 = vperm.xlu0 %1915, %v1862
      %v1917 = vpop.permute.xlu0 %1916
      %1920 = vset.pattern.permute.xlu0 0
      %1921 = vperm.xlu0 %1920, %v1863
      %v1922 = vpop.permute.xlu0 %1921
      %1925 = vset.pattern.permute.xlu0 0
      %1926 = vperm.xlu0 %1925, %v1864
      %v1927 = vpop.permute.xlu0 %1926
      %1930 = vset.pattern.permute.xlu0 0
      %1931 = vperm.xlu0 %1930, %v1865
      %v1932 = vpop.permute.xlu0 %1931
      %1935 = vset.pattern.permute.xlu0 0
      %1936 = vperm.xlu0 %1935, %v1866
      %v1937 = vpop.permute.xlu0 %1936
      %1940 = vset.pattern.permute.xlu0 0
      %1941 = vperm.xlu0 %1940, %v1867
      %v1942 = vpop.permute.xlu0 %1941
      %1945 = vset.pattern.permute.xlu0 0
      %1946 = vperm.xlu0 %1945, %v1868
      %v1947 = vpop.permute.xlu0 %1946
      %v1981 = vunpack.c.l.b16 %v1529
      %v1982 = vunpack.c.h.b16 %v1529
      %v1983 = vunpack.c.l.b16 %v1530
      %v1984 = vunpack.c.l.b16 %v1531
      %v1985 = vunpack.c.h.b16 %v1531
      %v1986 = vunpack.c.l.b16 %v1532
      %v1987 = vunpack.c.l.b16 %v1533
      %v1988 = vunpack.c.h.b16 %v1533
      %v1989 = vunpack.c.l.b16 %v1534
      %v1990 = vunpack.c.l.b16 %v1535
      %v1991 = vunpack.c.h.b16 %v1535
      %v1992 = vunpack.c.l.b16 %v1536
      %v1993 = vunpack.c.l.b16 %v1537
      %v1994 = vunpack.c.h.b16 %v1537
      %v1995 = vunpack.c.l.b16 %v1538
      %v1996 = vunpack.c.l.b16 %v1539
      %v1997 = vunpack.c.h.b16 %v1539
      %v1998 = vunpack.c.l.b16 %v1540
      %v1999 = vunpack.c.l.b16 %v1541
      %v2000 = vunpack.c.h.b16 %v1541
      %v2001 = vunpack.c.l.b16 %v1542
      %v2002 = vunpack.c.l.b16 %v1543
      %v2003 = vunpack.c.h.b16 %v1543
      %v2004 = vunpack.c.l.b16 %v1544
      %v2005 = vunpack.c.l.b16 %v1545
      %v2006 = vunpack.c.h.b16 %v1545
      %v2007 = vunpack.c.l.b16 %v1546
      %v2008 = vunpack.c.l.b16 %v1547
      %v2009 = vunpack.c.h.b16 %v1547
      %v2010 = vunpack.c.l.b16 %v1548
      %v2011 = vunpack.c.l.b16 %v1549
      %v2012 = vunpack.c.h.b16 %v1549
      %v2013 = vunpack.c.l.b16 %v1550
      %v2014 = vunpack.c.l.b16 %v1551
      %v2015 = vunpack.c.h.b16 %v1551
      %v2016 = vunpack.c.l.b16 %v1552
      %v2017 = vunpack.c.l.b16 %v1553
      %v2018 = vunpack.c.h.b16 %v1553
      %v2019 = vunpack.c.l.b16 %v1554
      %v2020 = vunpack.c.l.b16 %v1555
      %v2021 = vunpack.c.h.b16 %v1555
      %v2022 = vunpack.c.l.b16 %v1556
      %v2023 = vunpack.c.l.b16 %v1557
      %v2024 = vunpack.c.h.b16 %v1557
      %v2025 = vunpack.c.l.b16 %v1558
      %v2026 = vunpack.c.l.b16 %v1559
      %v2027 = vunpack.c.h.b16 %v1559
      %v2028 = vunpack.c.l.b16 %v1560
      %v2029 = vpack.c.b16 %v1984, %v1981
      %v2030 = vpack.c.b16 %v1985, %v1982
      %v2031 = vpack.c.b16 %v1986, %v1983
      %v2032 = vpack.c.b16 %v1990, %v1987
      %v2033 = vpack.c.b16 %v1991, %v1988
      %v2034 = vpack.c.b16 %v1992, %v1989
      %v2035 = vpack.c.b16 %v1996, %v1993
      %v2036 = vpack.c.b16 %v1997, %v1994
      %v2037 = vpack.c.b16 %v1998, %v1995
      %v2038 = vpack.c.b16 %v2002, %v1999
      %v2039 = vpack.c.b16 %v2003, %v2000
      %v2040 = vpack.c.b16 %v2004, %v2001
      %v2041 = vpack.c.b16 %v2008, %v2005
      %v2042 = vpack.c.b16 %v2009, %v2006
      %v2043 = vpack.c.b16 %v2010, %v2007
      %v2044 = vpack.c.b16 %v2014, %v2011
      %v2045 = vpack.c.b16 %v2015, %v2012
      %v2046 = vpack.c.b16 %v2016, %v2013
      %v2047 = vpack.c.b16 %v2020, %v2017
      %v2048 = vpack.c.b16 %v2021, %v2018
      %v2049 = vpack.c.b16 %v2022, %v2019
      %v2050 = vpack.c.b16 %v2026, %v2023
      %v2051 = vpack.c.b16 %v2027, %v2024
      %v2052 = vpack.c.b16 %v2028, %v2025
      %v2070 = vsel %vm731, %v2031, 0
      %v2073 = vsel %vm731, %v2034, 0
      %v2076 = vsel %vm731, %v2037, 0
      %v2079 = vsel %vm731, %v2040, 0
      %v2082 = vsel %vm731, %v2043, 0
      %v2085 = vsel %vm731, %v2046, 0
      %v2088 = vsel %vm731, %v2049, 0
      %v2091 = vsel %vm731, %v2052, 0
      %2093 = vmatprep.subr.bf16.mxu0 %v1594
      %2094 = vmatpush1.bf16.msra.mxu0 %v1593
      %2095 = vmatprep.subr.bf16.mxu0 %v1596
      %2096 = vmatpush1.bf16.msra.mxu0 %v1595
      %2097 = vmatprep.subr.bf16.mxu0 %v1630
      %2098 = vmatpush1.bf16.msra.mxu0 %v1629
      %2099 = vmatprep.subr.bf16.mxu0 %v1632
      %2100 = vmatpush1.bf16.msra.mxu0 %v1631
      %2101 = vmatprep.subr.bf16.mxu0 %v1666
      %2102 = vmatpush1.bf16.msra.mxu0 %v1665
      %2103 = vmatprep.subr.bf16.mxu0 %v1668
      %2104 = vmatpush1.bf16.msra.mxu0 %v1667
      %2105 = vmatprep.subr.bf16.mxu0 %v1702
      %2106 = vmatpush1.bf16.msra.mxu0 %v1701
      %2107 = vmatprep.subr.bf16.mxu0 %v1704
      %2108 = vmatpush1.bf16.msra.mxu0 %v1703
      %2109 = vmatprep.subr.bf16.mxu0 %v1706
      %2110 = vmatpush1.bf16.msra.mxu0 %v1705
      %2111 = vmatprep.subr.bf16.mxu0 %v1708
      %2112 = vmatpush1.bf16.msra.mxu0 %v1707
      %2113 = vmatprep.subr.bf16.mxu0 %v1742
      %2114 = vmatpush1.bf16.msra.mxu0 %v1741
      %2115 = vmatprep.subr.bf16.mxu0 %v1744
      %2116 = vmatpush1.bf16.msra.mxu0 %v1743
      %2117 = vmatprep.subr.bf16.mxu0 %v1778
      %2118 = vmatpush1.bf16.msra.mxu0 %v1777
      %2119 = vmatprep.subr.bf16.mxu0 %v1780
      %2120 = vmatpush1.bf16.msra.mxu0 %v1779
      %2121 = vmatprep.subr.bf16.mxu0 %v1814
      %2122 = vmatpush1.bf16.msra.mxu0 %v1813
      %2123 = vmatprep.subr.bf16.mxu0 %v1816
      %2124 = vmatpush1.bf16.msra.mxu0 %v1815
      %2125 = vmatprep.mubr.bf16.mxu0 %v2030
      %2126 = vmatmul.mubr.bf16.gmra.mrb[0].mxu0 %v2029
      %v2127 = vpop.f32.mrb[0].mxu0
      %v2128 = vadd.f32 %v1872, %v2127
      %v2129 = vpop.f32.mrb[0].mxu0
      %v2130 = vadd.f32 %v1872, %v2129
      %v2131 = vpop.f32.mrb[0].mxu0
      %v2132 = vadd.f32 %v1877, %v2131
      %v2133 = vpop.f32.mrb[0].mxu0
      %v2134 = vadd.f32 %v1877, %v2133
      %2135 = vmatprep.mubr.bf16.mxu0 %v2033
      %2136 = vmatmul.mubr.bf16.gmra.mrb[0].mxu0 %v2032
      %v2137 = vpop.f32.mrb[0].mxu0
      %v2138 = vadd.f32 %v1882, %v2137
      %v2139 = vpop.f32.mrb[0].mxu0
      %v2140 = vadd.f32 %v1882, %v2139
      %v2141 = vpop.f32.mrb[0].mxu0
      %v2142 = vadd.f32 %v1887, %v2141
      %v2143 = vpop.f32.mrb[0].mxu0
      %v2144 = vadd.f32 %v1887, %v2143
      %2145 = vmatprep.mubr.bf16.mxu0 %v2036
      %2146 = vmatmul.mubr.bf16.gmra.mrb[0].mxu0 %v2035
      %v2147 = vpop.f32.mrb[0].mxu0
      %v2148 = vadd.f32 %v1892, %v2147
      %v2149 = vpop.f32.mrb[0].mxu0
      %v2150 = vadd.f32 %v1892, %v2149
      %v2151 = vpop.f32.mrb[0].mxu0
      %v2152 = vadd.f32 %v1897, %v2151
      %v2153 = vpop.f32.mrb[0].mxu0
      %v2154 = vadd.f32 %v1897, %v2153
      %2155 = vmatprep.mubr.bf16.mxu0 %v2039
      %2156 = vmatmul.mubr.bf16.gmra.mrb[0].mxu0 %v2038
      %v2157 = vpop.f32.mrb[0].mxu0
      %v2158 = vadd.f32 %v1902, %v2157
      %v2159 = vpop.f32.mrb[0].mxu0
      %v2160 = vadd.f32 %v1902, %v2159
      %v2161 = vpop.f32.mrb[0].mxu0
      %v2162 = vadd.f32 %v1907, %v2161
      %v2163 = vpop.f32.mrb[0].mxu0
      %v2164 = vadd.f32 %v1907, %v2163
      %2165 = vmatprep.mubr.bf16.mxu0 %v2042
      %2166 = vmatmul.mubr.bf16.gmra.mrb[0].mxu0 %v2041
      %v2167 = vpop.f32.mrb[0].mxu0
      %v2168 = vadd.f32 %v1912, %v2167
      %v2169 = vpop.f32.mrb[0].mxu0
      %v2170 = vadd.f32 %v1912, %v2169
      %v2171 = vpop.f32.mrb[0].mxu0
      %v2172 = vadd.f32 %v1917, %v2171
      %v2173 = vpop.f32.mrb[0].mxu0
      %v2174 = vadd.f32 %v1917, %v2173
      %2175 = vmatprep.mubr.bf16.mxu0 %v2045
      %2176 = vmatmul.mubr.bf16.gmra.mrb[0].mxu0 %v2044
      %v2177 = vpop.f32.mrb[0].mxu0
      %v2178 = vadd.f32 %v1922, %v2177
      %v2179 = vpop.f32.mrb[0].mxu0
      %v2180 = vadd.f32 %v1922, %v2179
      %v2181 = vpop.f32.mrb[0].mxu0
      %v2182 = vadd.f32 %v1927, %v2181
      %v2183 = vpop.f32.mrb[0].mxu0
      %v2184 = vadd.f32 %v1927, %v2183
      %2185 = vmatprep.mubr.bf16.mxu0 %v2048
      %2186 = vmatmul.mubr.bf16.gmra.mrb[0].mxu0 %v2047
      %v2187 = vpop.f32.mrb[0].mxu0
      %v2188 = vadd.f32 %v1932, %v2187
      %v2189 = vpop.f32.mrb[0].mxu0
      %v2190 = vadd.f32 %v1932, %v2189
      %v2191 = vpop.f32.mrb[0].mxu0
      %v2192 = vadd.f32 %v1937, %v2191
      %v2193 = vpop.f32.mrb[0].mxu0
      %v2194 = vadd.f32 %v1937, %v2193
      %2195 = vmatprep.mubr.bf16.mxu0 %v2051
      %2196 = vmatmul.mubr.bf16.gmra.mrb[0].mxu0 %v2050
      %v2197 = vpop.f32.mrb[0].mxu0
      %v2198 = vadd.f32 %v1942, %v2197
      %v2199 = vpop.f32.mrb[0].mxu0
      %v2200 = vadd.f32 %v1942, %v2199
      %v2201 = vpop.f32.mrb[0].mxu0
      %v2202 = vadd.f32 %v1947, %v2201
      %v2203 = vpop.f32.mrb[0].mxu0
      %v2204 = vadd.f32 %v1947, %v2203
      %2205 = vdwg.mxu0
      %2206 = vmatprep.subr.bf16.mxu0 %v1850
      %2207 = vmatpush1.bf16.msra.mxu0 %v1849
      %2208 = vmatprep.subr.bf16.mxu0 %v1852
      %2209 = vmatpush1.bf16.msra.mxu0 %v1851
      %2210 = vmatprep.subr.bf16.mxu0 0
      %2211 = vmatpush1.bf16.msra.mxu0 0
      %2212 = vmatprep.subr.bf16.mxu0 0
      %2213 = vmatpush1.bf16.msra.mxu0 0
      %2214 = vmatprep.subr.bf16.mxu0 0
      %2215 = vmatpush1.bf16.msra.mxu0 0
      %2216 = vmatprep.subr.bf16.mxu0 0
      %2217 = vmatpush1.bf16.msra.mxu0 0
      %2218 = vmatprep.subr.bf16.mxu0 0
      %2219 = vmatpush1.bf16.msra.mxu0 0
      %2220 = vmatprep.subr.bf16.mxu0 0
      %2221 = vmatpush1.bf16.msra.mxu0 0
      %2222 = vmatprep.subr.bf16.mxu0 0
      %2223 = vmatpush1.bf16.msra.mxu0 0
      %2224 = vmatprep.subr.bf16.mxu0 0
      %2225 = vmatpush1.bf16.msra.mxu0 0
      %2226 = vmatprep.subr.bf16.mxu0 0
      %2227 = vmatpush1.bf16.msra.mxu0 0
      %2228 = vmatprep.subr.bf16.mxu0 0
      %2229 = vmatpush1.bf16.msra.mxu0 0
      %2230 = vmatprep.subr.bf16.mxu0 0
      %2231 = vmatpush1.bf16.msra.mxu0 0
      %2232 = vmatprep.subr.bf16.mxu0 0
      %2233 = vmatpush1.bf16.msra.mxu0 0
      %2234 = vmatprep.subr.bf16.mxu0 0
      %2235 = vmatpush1.bf16.msra.mxu0 0
      %2236 = vmatprep.subr.bf16.mxu0 0
      %2237 = vmatpush1.bf16.msra.mxu0 0
      %2238 = vmatprep.mubr.bf16.mxu0 0
      %2239 = vmatmul.mubr.bf16.gmra.mrb[0].mxu0 %v2070
      %v2240 = vpop.f32.mrb[0].mxu0
      %v2241 = vadd.f32 %v2128, %v2240
      %v2242 = vpop.f32.mrb[0].mxu0
      %v2243 = vadd.f32 %v2130, %v2242
      %v2244 = vpop.f32.mrb[0].mxu0
      %v2245 = vadd.f32 %v2132, %v2244
      %v2246 = vpop.f32.mrb[0].mxu0
      %v2247 = vadd.f32 %v2134, %v2246
      %2248 = vmatprep.mubr.bf16.mxu0 0
      %2249 = vmatmul.mubr.bf16.gmra.mrb[0].mxu0 %v2073
      %v2250 = vpop.f32.mrb[0].mxu0
      %v2251 = vadd.f32 %v2138, %v2250
      %v2252 = vpop.f32.mrb[0].mxu0
      %v2253 = vadd.f32 %v2140, %v2252
      %v2254 = vpop.f32.mrb[0].mxu0
      %v2255 = vadd.f32 %v2142, %v2254
      %v2256 = vpop.f32.mrb[0].mxu0
      %v2257 = vadd.f32 %v2144, %v2256
      %2258 = vmatprep.mubr.bf16.mxu0 0
      %2259 = vmatmul.mubr.bf16.gmra.mrb[0].mxu0 %v2076
      %v2260 = vpop.f32.mrb[0].mxu0
      %v2261 = vadd.f32 %v2148, %v2260
      %v2262 = vpop.f32.mrb[0].mxu0
      %v2263 = vadd.f32 %v2150, %v2262
      %v2264 = vpop.f32.mrb[0].mxu0
      %v2265 = vadd.f32 %v2152, %v2264
      %v2266 = vpop.f32.mrb[0].mxu0
      %v2267 = vadd.f32 %v2154, %v2266
      %2268 = vmatprep.mubr.bf16.mxu0 0
      %2269 = vmatmul.mubr.bf16.gmra.mrb[0].mxu0 %v2079
      %v2270 = vpop.f32.mrb[0].mxu0
      %v2271 = vadd.f32 %v2158, %v2270
      %v2272 = vpop.f32.mrb[0].mxu0
      %v2273 = vadd.f32 %v2160, %v2272
      %v2274 = vpop.f32.mrb[0].mxu0
      %v2275 = vadd.f32 %v2162, %v2274
      %v2276 = vpop.f32.mrb[0].mxu0
      %v2277 = vadd.f32 %v2164, %v2276
      %2278 = vmatprep.mubr.bf16.mxu0 0
      %2279 = vmatmul.mubr.bf16.gmra.mrb[0].mxu0 %v2082
      %v2280 = vpop.f32.mrb[0].mxu0
      %v2281 = vadd.f32 %v2168, %v2280
      %v2282 = vpop.f32.mrb[0].mxu0
      %v2283 = vadd.f32 %v2170, %v2282
      %v2284 = vpop.f32.mrb[0].mxu0
      %v2285 = vadd.f32 %v2172, %v2284
      %v2286 = vpop.f32.mrb[0].mxu0
      %v2287 = vadd.f32 %v2174, %v2286
      %2288 = vmatprep.mubr.bf16.mxu0 0
      %2289 = vmatmul.mubr.bf16.gmra.mrb[0].mxu0 %v2085
      %v2290 = vpop.f32.mrb[0].mxu0
      %v2291 = vadd.f32 %v2178, %v2290
      %v2292 = vpop.f32.mrb[0].mxu0
      %v2293 = vadd.f32 %v2180, %v2292
      %v2294 = vpop.f32.mrb[0].mxu0
      %v2295 = vadd.f32 %v2182, %v2294
      %v2296 = vpop.f32.mrb[0].mxu0
      %v2297 = vadd.f32 %v2184, %v2296
      %2298 = vmatprep.mubr.bf16.mxu0 0
      %2299 = vmatmul.mubr.bf16.gmra.mrb[0].mxu0 %v2088
      %v2300 = vpop.f32.mrb[0].mxu0
      %v2301 = vadd.f32 %v2188, %v2300
      %v2302 = vpop.f32.mrb[0].mxu0
      %v2303 = vadd.f32 %v2190, %v2302
      %v2304 = vpop.f32.mrb[0].mxu0
      %v2305 = vadd.f32 %v2192, %v2304
      %v2306 = vpop.f32.mrb[0].mxu0
      %v2307 = vadd.f32 %v2194, %v2306
      %2308 = vmatprep.mubr.bf16.mxu0 0
      %2309 = vmatmul.mubr.bf16.gmra.mrb[0].mxu0 %v2091
      %v2310 = vpop.f32.mrb[0].mxu0
      %v2311 = vadd.f32 %v2198, %v2310
      %v2312 = vpop.f32.mrb[0].mxu0
      %v2313 = vadd.f32 %v2200, %v2312
      %v2314 = vpop.f32.mrb[0].mxu0
      %v2315 = vadd.f32 %v2202, %v2314
      %v2316 = vpop.f32.mrb[0].mxu0
      %v2317 = vadd.f32 %v2204, %v2316
      %2318 = vdwg.mxu0
      %v2319 = vxor.u32 %v2241, 2147483648
      %v2320 = vxor.u32 %v2243, 2147483648
      %v2321 = vxor.u32 %v2245, 2147483648
      %v2322 = vxor.u32 %v2247, 2147483648
      %v2323 = vxor.u32 %v2251, 2147483648
      %v2324 = vxor.u32 %v2253, 2147483648
      %v2325 = vxor.u32 %v2255, 2147483648
      %v2326 = vxor.u32 %v2257, 2147483648
      %v2327 = vxor.u32 %v2261, 2147483648
      %v2328 = vxor.u32 %v2263, 2147483648
      %v2329 = vxor.u32 %v2265, 2147483648
      %v2330 = vxor.u32 %v2267, 2147483648
      %v2331 = vxor.u32 %v2271, 2147483648
      %v2332 = vxor.u32 %v2273, 2147483648
      %v2333 = vxor.u32 %v2275, 2147483648
      %v2334 = vxor.u32 %v2277, 2147483648
      %v2335 = vxor.u32 %v2281, 2147483648
      %v2336 = vxor.u32 %v2283, 2147483648
      %v2337 = vxor.u32 %v2285, 2147483648
      %v2338 = vxor.u32 %v2287, 2147483648
      %v2339 = vxor.u32 %v2291, 2147483648
      %v2340 = vxor.u32 %v2293, 2147483648
      %v2341 = vxor.u32 %v2295, 2147483648
      %v2342 = vxor.u32 %v2297, 2147483648
      %v2343 = vxor.u32 %v2301, 2147483648
      %v2344 = vxor.u32 %v2303, 2147483648
      %v2345 = vxor.u32 %v2305, 2147483648
      %v2346 = vxor.u32 %v2307, 2147483648
      %v2347 = vxor.u32 %v2311, 2147483648
      %v2348 = vxor.u32 %v2313, 2147483648
      %v2349 = vxor.u32 %v2315, 2147483648
      %v2350 = vxor.u32 %v2317, 2147483648
      %v2351 = vmul.f32 %v2319, 1.442695
      %v2352 = vpow.pop %v2351
      %v2353 = vmul.f32 %v2320, 1.442695
      %v2354 = vpow.pop %v2353
      %v2355 = vmul.f32 %v2321, 1.442695
      %v2356 = vpow.pop %v2355
      %v2357 = vmul.f32 %v2322, 1.442695
      %v2358 = vpow.pop %v2357
      %v2359 = vmul.f32 %v2323, 1.442695
      %v2360 = vpow.pop %v2359
      %v2361 = vmul.f32 %v2324, 1.442695
      %v2362 = vpow.pop %v2361
      %v2363 = vmul.f32 %v2325, 1.442695
      %v2364 = vpow.pop %v2363
      %v2365 = vmul.f32 %v2326, 1.442695
      %v2366 = vpow.pop %v2365
      %v2367 = vmul.f32 %v2327, 1.442695
      %v2368 = vpow.pop %v2367
      %v2369 = vmul.f32 %v2328, 1.442695
      %v2370 = vpow.pop %v2369
      %v2371 = vmul.f32 %v2329, 1.442695
      %v2372 = vpow.pop %v2371
      %v2373 = vmul.f32 %v2330, 1.442695
      %v2374 = vpow.pop %v2373
      %v2375 = vmul.f32 %v2331, 1.442695
      %v2376 = vpow.pop %v2375
      %v2377 = vmul.f32 %v2332, 1.442695
      %v2378 = vpow.pop %v2377
      %v2379 = vmul.f32 %v2333, 1.442695
      %v2380 = vpow.pop %v2379
      %v2381 = vmul.f32 %v2334, 1.442695
      %v2382 = vpow.pop %v2381
      %v2383 = vmul.f32 %v2335, 1.442695
      %v2384 = vpow.pop %v2383
      %v2385 = vmul.f32 %v2336, 1.442695
      %v2386 = vpow.pop %v2385
      %v2387 = vmul.f32 %v2337, 1.442695
      %v2388 = vpow.pop %v2387
      %v2389 = vmul.f32 %v2338, 1.442695
      %v2390 = vpow.pop %v2389
      %v2391 = vmul.f32 %v2339, 1.442695
      %v2392 = vpow.pop %v2391
      %v2393 = vmul.f32 %v2340, 1.442695
      %v2394 = vpow.pop %v2393
      %v2395 = vmul.f32 %v2341, 1.442695
      %v2396 = vpow.pop %v2395
      %v2397 = vmul.f32 %v2342, 1.442695
      %v2398 = vpow.pop %v2397
      %v2399 = vmul.f32 %v2343, 1.442695
      %v2400 = vpow.pop %v2399
      %v2401 = vmul.f32 %v2344, 1.442695
      %v2402 = vpow.pop %v2401
      %v2403 = vmul.f32 %v2345, 1.442695
      %v2404 = vpow.pop %v2403
      %v2405 = vmul.f32 %v2346, 1.442695
      %v2406 = vpow.pop %v2405
      %v2407 = vmul.f32 %v2347, 1.442695
      %v2408 = vpow.pop %v2407
      %v2409 = vmul.f32 %v2348, 1.442695
      %v2410 = vpow.pop %v2409
      %v2411 = vmul.f32 %v2349, 1.442695
      %v2412 = vpow.pop %v2411
      %v2413 = vmul.f32 %v2350, 1.442695
      %v2414 = vpow.pop %v2413
      %v2415 = vadd.f32 %v2352, 1.0
      %v2416 = vadd.f32 %v2354, 1.0
      %v2417 = vadd.f32 %v2356, 1.0
      %v2418 = vadd.f32 %v2358, 1.0
      %v2419 = vadd.f32 %v2360, 1.0
      %v2420 = vadd.f32 %v2362, 1.0
      %v2421 = vadd.f32 %v2364, 1.0
      %v2422 = vadd.f32 %v2366, 1.0
      %v2423 = vadd.f32 %v2368, 1.0
      %v2424 = vadd.f32 %v2370, 1.0
      %v2425 = vadd.f32 %v2372, 1.0
      %v2426 = vadd.f32 %v2374, 1.0
      %v2427 = vadd.f32 %v2376, 1.0
      %v2428 = vadd.f32 %v2378, 1.0
      %v2429 = vadd.f32 %v2380, 1.0
      %v2430 = vadd.f32 %v2382, 1.0
      %v2431 = vadd.f32 %v2384, 1.0
      %v2432 = vadd.f32 %v2386, 1.0
      %v2433 = vadd.f32 %v2388, 1.0
      %v2434 = vadd.f32 %v2390, 1.0
      %v2435 = vadd.f32 %v2392, 1.0
      %v2436 = vadd.f32 %v2394, 1.0
      %v2437 = vadd.f32 %v2396, 1.0
      %v2438 = vadd.f32 %v2398, 1.0
      %v2439 = vadd.f32 %v2400, 1.0
      %v2440 = vadd.f32 %v2402, 1.0
      %v2441 = vadd.f32 %v2404, 1.0
      %v2442 = vadd.f32 %v2406, 1.0
      %v2443 = vadd.f32 %v2408, 1.0
      %v2444 = vadd.f32 %v2410, 1.0
      %v2445 = vadd.f32 %v2412, 1.0
      %v2446 = vadd.f32 %v2414, 1.0
      %v2447 = vrcp.pop %v2415
      %v2448 = vmul.f32 1.0, %v2447
      %v2449 = vrcp.pop %v2416
      %v2450 = vmul.f32 1.0, %v2449
      %v2451 = vrcp.pop %v2417
      %v2452 = vmul.f32 1.0, %v2451
      %v2453 = vrcp.pop %v2418
      %v2454 = vmul.f32 1.0, %v2453
      %v2455 = vrcp.pop %v2419
      %v2456 = vmul.f32 1.0, %v2455
      %v2457 = vrcp.pop %v2420
      %v2458 = vmul.f32 1.0, %v2457
      %v2459 = vrcp.pop %v2421
      %v2460 = vmul.f32 1.0, %v2459
      %v2461 = vrcp.pop %v2422
      %v2462 = vmul.f32 1.0, %v2461
      %v2463 = vrcp.pop %v2423
      %v2464 = vmul.f32 1.0, %v2463
      %v2465 = vrcp.pop %v2424
      %v2466 = vmul.f32 1.0, %v2465
      %v2467 = vrcp.pop %v2425
      %v2468 = vmul.f32 1.0, %v2467
      %v2469 = vrcp.pop %v2426
      %v2470 = vmul.f32 1.0, %v2469
      %v2471 = vrcp.pop %v2427
      %v2472 = vmul.f32 1.0, %v2471
      %v2473 = vrcp.pop %v2428
      %v2474 = vmul.f32 1.0, %v2473
      %v2475 = vrcp.pop %v2429
      %v2476 = vmul.f32 1.0, %v2475
      %v2477 = vrcp.pop %v2430
      %v2478 = vmul.f32 1.0, %v2477
      %v2479 = vrcp.pop %v2431
      %v2480 = vmul.f32 1.0, %v2479
      %v2481 = vrcp.pop %v2432
      %v2482 = vmul.f32 1.0, %v2481
      %v2483 = vrcp.pop %v2433
      %v2484 = vmul.f32 1.0, %v2483
      %v2485 = vrcp.pop %v2434
      %v2486 = vmul.f32 1.0, %v2485
      %v2487 = vrcp.pop %v2435
      %v2488 = vmul.f32 1.0, %v2487
      %v2489 = vrcp.pop %v2436
      %v2490 = vmul.f32 1.0, %v2489
      %v2491 = vrcp.pop %v2437
      %v2492 = vmul.f32 1.0, %v2491
      %v2493 = vrcp.pop %v2438
      %v2494 = vmul.f32 1.0, %v2493
      %v2495 = vrcp.pop %v2439
      %v2496 = vmul.f32 1.0, %v2495
      %v2497 = vrcp.pop %v2440
      %v2498 = vmul.f32 1.0, %v2497
      %v2499 = vrcp.pop %v2441
      %v2500 = vmul.f32 1.0, %v2499
      %v2501 = vrcp.pop %v2442
      %v2502 = vmul.f32 1.0, %v2501
      %v2503 = vrcp.pop %v2443
      %v2504 = vmul.f32 1.0, %v2503
      %v2505 = vrcp.pop %v2444
      %v2506 = vmul.f32 1.0, %v2505
      %v2507 = vrcp.pop %v2445
      %v2508 = vmul.f32 1.0, %v2507
      %v2509 = vrcp.pop %v2446
      %v2510 = vmul.f32 1.0, %v2509
      %2511 = vst [vmem:[%s278] sm:$0xff] %v2448
      %2512 = vst [vmem:[%s278 + $0x8] sm:$0xff] %v2450
      %2513 = vst [vmem:[%s278 + $0x10] sm:$0xff] %v2452
      %2514 = vst [vmem:[%s278 + $0x18] sm:$0xff] %v2454
      %2515 = vst [vmem:[%s278 + $0x20] sm:$0xff] %v2456
      %2516 = vst [vmem:[%s278 + $0x28] sm:$0xff] %v2458
      %2517 = vst [vmem:[%s278 + $0x30] sm:$0xff] %v2460
      %2518 = vst [vmem:[%s278 + $0x38] sm:$0xff] %v2462
      %2519 = vst [vmem:[%s278 + $0x40] sm:$0xff] %v2464
      %2520 = vst [vmem:[%s278 + $0x48] sm:$0xff] %v2466
      %2521 = vst [vmem:[%s278 + $0x50] sm:$0xff] %v2468
      %2522 = vst [vmem:[%s278 + $0x58] sm:$0xff] %v2470
      %2523 = vst [vmem:[%s278 + $0x60] sm:$0xff] %v2472
      %2524 = vst [vmem:[%s278 + $0x68] sm:$0xff] %v2474
      %2525 = vst [vmem:[%s278 + $0x70] sm:$0xff] %v2476
      %2526 = vst [vmem:[%s278 + $0x78] sm:$0xff] %v2478
      %2527 = vst [vmem:[%s278 + $0x80] sm:$0xff] %v2480
      %2528 = vst [vmem:[%s278 + $0x88] sm:$0xff] %v2482
      %2529 = vst [vmem:[%s278 + $0x90] sm:$0xff] %v2484
      %2530 = vst [vmem:[%s278 + $0x98] sm:$0xff] %v2486
      %2531 = vst [vmem:[%s278 + $0xa0] sm:$0xff] %v2488
      %2532 = vst [vmem:[%s278 + $0xa8] sm:$0xff] %v2490
      %2533 = vst [vmem:[%s278 + $0xb0] sm:$0xff] %v2492
      %2534 = vst [vmem:[%s278 + $0xb8] sm:$0xff] %v2494
      %2535 = vst [vmem:[%s278 + $0xc0] sm:$0xff] %v2496
      %2536 = vst [vmem:[%s278 + $0xc8] sm:$0xff] %v2498
      %2537 = vst [vmem:[%s278 + $0xd0] sm:$0xff] %v2500
      %2538 = vst [vmem:[%s278 + $0xd8] sm:$0xff] %v2502
      %2539 = vst [vmem:[%s278 + $0xe0] sm:$0xff] %v2504
      %2540 = vst [vmem:[%s278 + $0xe8] sm:$0xff] %v2506
      %2541 = vst [vmem:[%s278 + $0xf0] sm:$0xff] %v2508
      %2542 = vst [vmem:[%s278 + $0xf8] sm:$0xff] %v2510
      %p2543 = scmp.lt.s32.totalorder %s18, 1
      %s2544 = scalar_select %p2543, %s18, 1
      %s2545 = smul.addr %s2544, 32
      %s2546 = smul.addr %s2545, 8
      %s2547 = scalar_lea.vmem %s7, %s2546
      // Predicated region
      $region49: #{class_net_pallas.1} parent=47 // pred_check
        %p2548 = pneg %p188
      $region50: #{class_net_pallas.1} parent=47 // pred_check_branch
        %2550 = sbr.rel (%p2548) target = $region52
      $region51: #{class_net_pallas.1} parent=47 // pred_region
        _
      $region52: #{class_net_pallas.1} parent=47 // pred_fallthru
        _
    $region48: #{class_net_pallas.1} parent=5 // pred_fallthru
      _
    %p2551 = scmp.le.s32.totalorder 2, %s13
    // Predicated region
    $region53: #{class_net_pallas.1} parent=5 // pred_check
      %p2552 = pneg %p2551
    $region54: #{class_net_pallas.1} parent=5 // pred_check_branch
      %2554 = sbr.rel (%p2552) target = $region56
    $region55: #{class_net_pallas.1} parent=5 // pred_region
      %s2555 = ssub.s32 %s13, 2
      // Predicated region
      $region57: #{class_net_pallas.1} parent=55 // pred_check
        %p2556 = pneg %p194
      $region58: #{class_net_pallas.1} parent=55 // pred_check_branch
        %2558 = sbr.rel (%p2556) target = $region60
      $region59: #{class_net_pallas.1} parent=55 // pred_region
        %p2559 = scmp.lt.s32.totalorder %s19, 1
        %s2560 = scalar_select %p2559, %s19, 1
        %s2561 = smul.addr %s2560, 32
        %s2562 = smul.addr %s2561, 8
        %s2563 = scalar_lea.vmem %s7, %s2562
      $region60: #{class_net_pallas.1} parent=55 // pred_fallthru
        _
    $region56: #{class_net_pallas.1} parent=5 // pred_fallthru
      _
  $region6: #{class_net_pallas.1} parent=0 // loop_footer
    %s17 = sadd.s32 1, %s13
  $region7: #{class_net_pallas.1} parent=0 // loop_footer_branch
    %12 = sbr.rel target = $region3
  $region8: #{class_net_pallas.1} parent=0 // loop_exit
    _

</llo_original>
